<compile_context>
chip_gen: v7x
topology: tpu7x:2x2x1
jax: 0.10.0
libtpu: 0.0.40
codegen_flags: <defaults>
</compile_context>

<pallas_src>
import numpy as np

import jax
import jax.numpy as jnp
from jax.experimental import pallas as pl
from jax.experimental.pallas import tpu as pltpu

# ---- static module config -----------------------------------------------------
IN_CH = 4
DIM = 8                                        # out_channels * dim_ratio
ORDER = 2
DIMS = [DIM // 2 ** i for i in range(ORDER)][::-1]   # [4, 8]
D0, D1 = DIMS
SUM_DIMS = sum(DIMS)                           # 12 == GlobalLocalConv2Norm dim
C_HALF = SUM_DIMS // 2                         # 6
B, H, W = 2, 16, 16
HW = H * W                                     # 256 pixels -> lane dimension
WF = W // 2 + 1                                # rfft width (9)
HWF = H * WF                                   # 144 spectral bins / channel
EPS = 1e-6
SLAB = 8                                       # padded per-branch channel slab

# packed-constant row offsets (all 8-aligned)
M_WPI, M_PWW, M_GSL, M_GSG = 0, 24, 32, 48                         # mats (64, 8)
V_BPI, V_PREG1, V_PREB1, V_PREG2, V_PREB2, V_BSEL, V_PWB = (
    0, 24, 32, 40, 48, 56, 72)                                     # vecs (80, 1)
V_ROWS = 80


# ---- the fused Pallas kernel ---------------------------------------------------
def _gnconv_fused_kernel(x_ref, tf_ref, ti_ref, cw_ref, tapw_ref,
                         mats_ref, vecs_ref, o_ref):
    f32, bf16 = jnp.float32, jnp.bfloat16
    x = x_ref[0]                                              # (8, HW); rows 4:8 are zero pad

    # proj_in (1x1 conv); output channels pre-permuted into padded 8-row slabs
    w_pi = mats_ref[M_WPI:M_WPI + 3 * SLAB, :]                # (24, 8)
    b_pi = vecs_ref[V_BPI:V_BPI + 3 * SLAB, :]                # (24, 1)
    fused = jnp.dot(w_pi, x, preferred_element_type=f32) + b_pi
    f1 = fused[0:SLAB]                  # local-branch pre-LN channels (rows 6:8 == 0)
    f2 = fused[SLAB:2 * SLAB]           # global-branch pre-LN channels (rows 6:8 == 0)
    fp = fused[2 * SLAB:3 * SLAB]       # gating channels pwa           (rows 4:8 == 0)

    # pre_norm: channels_first LayerNorm over the 12 real channels of both slabs
    u = (jnp.sum(f1, axis=0, keepdims=True)
         + jnp.sum(f2, axis=0, keepdims=True)) * (1.0 / SUM_DIMS)
    d1, d2 = f1 - u, f2 - u
    var = (jnp.sum(d1 * d1, axis=0, keepdims=True)
           + jnp.sum(d2 * d2, axis=0, keepdims=True)
           - 4.0 * u * u) * (1.0 / SUM_DIMS)          # remove the 4 zero pad rows' (0-u)^2
    rstd = jax.lax.rsqrt(var + EPS)
    x1 = (d1 * rstd * vecs_ref[V_PREG1:V_PREG1 + SLAB, :]
          + vecs_ref[V_PREB1:V_PREB1 + SLAB, :])      # pad rows: gamma=beta=0 -> exactly 0
    x2 = (d2 * rstd * vecs_ref[V_PREG2:V_PREG2 + SLAB, :]
          + vecs_ref[V_PREB2:V_PREB2 + SLAB, :])

    # local branch: depthwise 3x3 (padding=1) = 8 lane rolls + 9 FMAs with
    # init-time (weight * edge-mask) tap constants — no iota/compare/select.
    x1c = tapw_ref[4 * SLAB:5 * SLAB, :] * x1                 # centre tap, shift 0
    for oi in (-1, 0, 1):
        for oj in (-1, 0, 1):
            if oi == 0 and oj == 0:
                continue
            tap = (oi + 1) * 3 + (oj + 1)
            s = oi * W + oj
            src = pltpu.roll(x1, (-s) % HW, 1)                # (8,256): tile-aligned roll
            x1c = x1c + tapw_ref[tap * SLAB:(tap + 1) * SLAB, :] * src

    # global branch: rfft2 -> * complex_weight -> irfft2 as real bf16 DFT matmuls
    x2b = x2.astype(bf16)
    re_f = jnp.dot(x2b, tf_ref[0:HW, :], preferred_element_type=f32)        # (8, HWF)
    im_f = jnp.dot(x2b, tf_ref[HW:2 * HW, :], preferred_element_type=f32)
    wr = cw_ref[0:SLAB, :]
    wi = cw_ref[SLAB:2 * SLAB, :]
    re_y = (re_f * wr - im_f * wi).astype(bf16)
    im_y = (re_f * wi + im_f * wr).astype(bf16)
    x2g = (jnp.dot(re_y, ti_ref[0:HWF, :], preferred_element_type=f32)
           - jnp.dot(im_y, ti_ref[HWF:2 * HWF, :], preferred_element_type=f32))  # (8, HW)

    # post_norm over the 12 interleaved channels: stats are permutation invariant;
    # both slabs' pad rows are exactly 0, so just remove their 4*(0-u2)^2 terms.
    u2 = (jnp.sum(x1c, axis=0, keepdims=True)
          + jnp.sum(x2g, axis=0, keepdims=True)) * (1.0 / SUM_DIMS)
    e1, e2 = x1c - u2, x2g - u2
    var2 = (jnp.sum(e1 * e1, axis=0, keepdims=True)
            + jnp.sum(e2 * e2, axis=0, keepdims=True)
            - 4.0 * u2 * u2) * (1.0 / SUM_DIMS)
    rstd2 = jax.lax.rsqrt(var2 + EPS)
    x1h = e1 * rstd2
    x2h = e2 * rstd2

    # channel interleave + post-LN gamma/beta + dw0/dw1 split folded into two
    # tiny selection matmuls (gamma inside the matrices, beta in the bias rows;
    # their columns 6:8 are zero so the pad rows of x1h/x2h never leak).
    gl = mats_ref[M_GSL:M_GSL + 2 * SLAB, :]                  # (16, 8)
    gg = mats_ref[M_GSG:M_GSG + 2 * SLAB, :]
    bsel = vecs_ref[V_BSEL:V_BSEL + 2 * SLAB, :]              # (16, 1)
    dwall = (jnp.dot(gl, x1h, preferred_element_type=f32)
             + jnp.dot(gg, x2h, preferred_element_type=f32) + bsel)
    dw0 = dwall[0:SLAB]                  # rows 4:8 == 0
    dw1 = dwall[SLAB:2 * SLAB]

    # gating -> pw (1x1 conv) -> gating ; proj_out is Identity
    pw_w = mats_ref[M_PWW:M_PWW + SLAB, :]                    # (8, 8), cols 4:8 == 0
    pw_b = vecs_ref[V_PWB:V_PWB + SLAB, :]
    y = fp * dw0
    o_ref[0] = (jnp.dot(pw_w, y, preferred_element_type=f32) + pw_b) * dw1


# ---- init-time operator construction -------------------------------------------
def _dft_operators(hs, ws):
    """Real/imag forward (rfft2, ortho) and inverse (irfft2, ortho) operators
    acting on flat (h*W + w) pixel vectors / (kh*WF + kw) spectral vectors."""
    wf = ws // 2 + 1
    h = np.arange(hs).reshape(hs, 1, 1, 1)
    w = np.arange(ws).reshape(1, ws, 1, 1)
    kh = np.arange(hs).reshape(1, 1, hs, 1)
    kw = np.arange(wf).reshape(1, 1, 1, wf)
    phase = 2.0 * np.pi * (kh * h / hs + kw * w / ws)         # (hs, ws, hs, wf)
    norm = 1.0 / np.sqrt(hs * ws)

    fwd = np.exp(-1j * phase) * norm                          # rfft2 (ortho)
    tf_r = fwd.real.reshape(hs * ws, hs * wf)
    tf_i = fwd.imag.reshape(hs * ws, hs * wf)

    scale = np.full((wf,), 2.0)                               # Hermitian folding
    scale[0] = 1.0
    if ws % 2 == 0:
        scale[-1] = 1.0
    inv = np.exp(1j * phase) * norm * scale.reshape(1, 1, 1, wf)
    ti_r = np.transpose(inv.real, (2, 3, 0, 1)).reshape(hs * wf, hs * ws)
    ti_i = np.transpose(inv.imag, (2, 3, 0, 1)).reshape(hs * wf, hs * ws)
    return tf_r, tf_i, ti_r, ti_i


def prepare_kernel_params(p):
    """One-time repacking of PyTorch-layout params into the kernel's padded
    8-row-slab layout: proj_in permutation, masked depthwise taps, bf16 DFT
    operators, interleave/post-LN selection matrices, packed small constants."""
    assert p['cw'].shape == (C_HALF, H, WF, 2), (
        'complex_weight must be created at (H, W//2+1)')
    # TODO(synk): the F.interpolate resize of complex_weight (module fallback
    # when its spatial shape differs from the rfft2 output) is not implemented;
    # the weight is built at (H, W//2+1) so the exact PyTorch fast path is used.

    f32 = np.float32
    piw = np.asarray(p['proj_in_w'], f32)                 # (IN_CH, 16)
    pib = np.asarray(p['proj_in_b'], f32)                 # (16,)
    pre_g = np.asarray(p['pre_g'], f32)
    pre_b = np.asarray(p['pre_b'], f32)
    post_g = np.asarray(p['post_g'], f32)
    post_b = np.asarray(p['post_b'], f32)
    dww = np.asarray(p['dw_w'], f32).reshape(9, C_HALF)   # tap index = di*3 + dj
    cw = np.asarray(p['cw'], f32)
    pww = np.asarray(p['pw_w'], f32)                      # (D0, D1)
    pwb = np.asarray(p['pw_b'], f32)                      # (D1,)

    # proj_in rows permuted into [x1 | x2 | pwa] padded 8-row slabs
    w_pack = np.zeros((3 * SLAB, SLAB), f32)
    b_pack = np.zeros((3 * SLAB,), f32)
    for r in range(C_HALF):
        w_pack[r, :IN_CH] = piw[:, D0 + r]                # x1 = fused channels 4..9
        b_pack[r] = pib[D0 + r]
        w_pack[SLAB + r, :IN_CH] = piw[:, D0 + C_HALF + r]    # x2 = fused 10..15
        b_pack[SLAB + r] = pib[D0 + C_HALF + r]
    for r in range(D0):
        w_pack[2 * SLAB + r, :IN_CH] = piw[:, r]          # pwa = fused 0..3
        b_pack[2 * SLAB + r] = pib[r]

    # pw (1x1 conv), K zero-padded to the 8-row gating slab
    pw_w = np.zeros((SLAB, SLAB), f32)
    pw_w[:, :D0] = pww.T

    # interleave + post-LN gamma -> selection matrices (beta -> bsel rows)
    gl = np.zeros((2 * SLAB, SLAB), f32)
    gg = np.zeros((2 * SLAB, SLAB), f32)
    bsel = np.zeros((2 * SLAB,), f32)
    for j in range(SUM_DIMS):                             # interleaved channel j
        out_row = j if j < D0 else SLAB + (j - D0)        # dw0 rows 0:4, dw1 rows 8:16
        (gl if j % 2 == 0 else gg)[out_row, j // 2] = post_g[j]
        bsel[out_row] = post_b[j]
    mats = np.concatenate([w_pack, pw_w, gl, gg], axis=0)     # (64, 8)

    vecs = np.zeros((V_ROWS, 1), f32)
    vecs[V_BPI:V_BPI + 3 * SLAB, 0] = b_pack
    vecs[V_PREG1:V_PREG1 + C_HALF, 0] = pre_g[:C_HALF]
    vecs[V_PREB1:V_PREB1 + C_HALF, 0] = pre_b[:C_HALF]
    vecs[V_PREG2:V_PREG2 + C_HALF, 0] = pre_g[C_HALF:]
    vecs[V_PREB2:V_PREB2 + C_HALF, 0] = pre_b[C_HALF:]
    vecs[V_BSEL:V_BSEL + 2 * SLAB, 0] = bsel
    vecs[V_PWB:V_PWB + D1, 0] = pwb

    # depthwise 3x3: per-tap (conv weight * edge-validity mask), 8-row slabs
    pos = np.arange(HW)
    rr, cc = pos // W, pos % W
    tapw = np.zeros((9 * SLAB, HW), f32)
    for oi in (-1, 0, 1):
        for oj in (-1, 0, 1):
            tap = (oi + 1) * 3 + (oj + 1)
            ok = ((rr + oi >= 0) & (rr + oi < H)
                  & (cc + oj >= 0) & (cc + oj < W)).astype(f32)
            tapw[tap * SLAB:tap * SLAB + C_HALF, :] = dww[tap][:, None] * ok[None, :]

    # real DFT operators for rfft2 / irfft2, packed and stored in bf16
    tf_r, tf_i, ti_r, ti_i = _dft_operators(H, W)
    tf_pack = np.concatenate([tf_r, tf_i], axis=0)        # (2*HW, HWF) = (512, 144)
    ti_pack = np.concatenate([ti_r, ti_i], axis=0)        # (2*HWF, HW) = (288, 256)

    cw_pack = np.zeros((2 * SLAB, HWF), f32)              # complex weight slabs
    cw_pack[:C_HALF] = cw[..., 0].reshape(C_HALF, HWF)
    cw_pack[SLAB:SLAB + C_HALF] = cw[..., 1].reshape(C_HALF, HWF)

    return dict(
        tf=jnp.asarray(tf_pack, jnp.bfloat16),
        ti=jnp.asarray(ti_pack, jnp.bfloat16),
        cw=jnp.asarray(cw_pack),
        tapw=jnp.asarray(tapw),
        mats=jnp.asarray(mats),
        vecs=jnp.asarray(vecs),
    )


_KP_ORDER = ('tf', 'ti', 'cw', 'tapw', 'mats', 'vecs')


# ---- forward pass (single fused pallas_call) ------------------------------------
def gnconv_forward(x_nchw, kp):
    b, cin, hh, ww = x_nchw.shape
    assert (cin, hh, ww) == (IN_CH, H, W), 'static config mismatch'
    hw = hh * ww
    x_flat = x_nchw.reshape(b, cin, hw)                   # free reshape, stays NC(HW)
    x_pad = jnp.pad(x_flat, ((0, 0), (0, SLAB - cin), (0, 0)))   # (B, 8, 256)

    operands = [kp[k] for k in _KP_ORDER]

    def const_spec(a):
        return pl.BlockSpec(a.shape, lambda i, _nd=a.ndim: (0,) * _nd)

    # grid=(B,) parallel: on v7x each TensorCore takes a batch; on v5e/v6e the
    # two steps run back-to-back with all constants resident (same block index
    # every step -> DMA'd only once per call per core).
    out = pl.pallas_call(
        _gnconv_fused_kernel,
        out_shape=jax.ShapeDtypeStruct((b, D1, hw), jnp.float32),
        grid=(b,),
        in_specs=[pl.BlockSpec((1, SLAB, hw), lambda i: (i, 0, 0))]
                 + [const_spec(a) for a in operands],
        out_specs=pl.BlockSpec((1, D1, hw), lambda i: (i, 0, 0)),
        compiler_params=pltpu.CompilerParams(
            dimension_semantics=("parallel",)),
    )(x_pad, *operands)
    return out.reshape(b, D1, hh, ww)


# ---- pure-JAX reference (mirrors the PyTorch NCHW semantics) ---------------------
def ref_forward(x, p):
    b, cin, hh, ww = x.shape
    d0, d1 = DIMS
    hp = jax.lax.Precision.HIGHEST

    def conv1x1(z, w, bias):
        return jnp.einsum('bchw,co->bohw', z, w, precision=hp) + bias[None, :, None, None]

    def ln_cf(z, gamma, beta, eps=EPS):
        u = jnp.mean(z, axis=1, keepdims=True)
        s = jnp.mean((z - u) ** 2, axis=1, keepdims=True)
        zn = (z - u) / jnp.sqrt(s + eps)
        return gamma[None, :, None, None] * zn + beta[None, :, None, None]

    fused = conv1x1(x, p['proj_in_w'], p['proj_in_b'])
    pwa, abc = fused[:, :d0], fused[:, d0:]
    a_ln = ln_cf(abc, p['pre_g'], p['pre_b'])
    x1, x2 = a_ln[:, :C_HALF], a_ln[:, C_HALF:]
    dwk = jnp.transpose(p['dw_w'], (2, 0, 1))[:, None]        # (C,1,3,3)
    x1c = jax.lax.conv_general_dilated(
        x1, dwk, (1, 1), ((1, 1), (1, 1)),
        feature_group_count=C_HALF,
        dimension_numbers=('NCHW', 'OIHW', 'NCHW'), precision=hp)
    x2f = jnp.fft.rfft2(x2, axes=(2, 3), norm='ortho')
    wc = p['cw'][..., 0] + 1j * p['cw'][..., 1]               # (C_HALF, H, WF)
    x2b = jnp.fft.irfft2(x2f * wc[None], s=(hh, ww), axes=(2, 3), norm='ortho')
    dw = jnp.stack([x1c, x2b], axis=2).reshape(b, SUM_DIMS, hh, ww)
    dw = ln_cf(dw, p['post_g'], p['post_b'])
    dw0, dw1 = dw[:, :d0], dw[:, d0:]
    y = pwa * dw0
    return conv1x1(y, p['pw_w'], p['pw_b']) * dw1


# ---- deterministic parameter init ------------------------------------------------
def init_params(key):
    ks = jax.random.split(key, 10)
    p = {}
    p['proj_in_w'] = jax.random.normal(ks[0], (IN_CH, 2 * DIM), jnp.float32) * 0.02
    p['proj_in_b'] = jax.random.normal(ks[1], (2 * DIM,), jnp.float32) * 0.02
    p['pre_g'] = 1.0 + 0.1 * jax.random.normal(ks[2], (SUM_DIMS,), jnp.float32)
    p['pre_b'] = 0.1 * jax.random.normal(ks[3], (SUM_DIMS,), jnp.float32)
    p['post_g'] = 1.0 + 0.1 * jax.random.normal(ks[4], (SUM_DIMS,), jnp.float32)
    p['post_b'] = 0.1 * jax.random.normal(ks[5], (SUM_DIMS,), jnp.float32)
    p['dw_w'] = jax.random.normal(ks[6], (3, 3, C_HALF), jnp.float32) * 0.1
    p['cw'] = jax.random.normal(ks[7], (C_HALF, H, WF, 2), jnp.float32) * 0.02
    p['pw_w'] = jax.random.normal(ks[8], (DIMS[0], DIMS[1]), jnp.float32) * 0.02
    p['pw_b'] = jax.random.normal(ks[9], (DIMS[1],), jnp.float32) * 0.02
    return p


if __name__ == "__main__":
    key = jax.random.PRNGKey(0)
    kx, kparam = jax.random.split(key)
    x = jax.random.normal(kx, (B, IN_CH, H, W), dtype=jnp.float32)
    params = init_params(kparam)
    kparams = prepare_kernel_params(params)      # init-time layout plumbing

    fwd = jax.jit(gnconv_forward)
    out = jax.block_until_ready(fwd(x, kparams))
    assert out.shape == (B, DIM, H, W), out.shape

    ref = jax.block_until_ready(ref_forward(x, params))
    err = float(jnp.max(jnp.abs(out - ref)))
    if not jnp.allclose(out, ref, rtol=5e-2, atol=1e-3):
        raise AssertionError(f"mismatch vs reference, max abs err = {err}")

    print("KERNEL_OK")
</pallas_src>

<mosaic_0001>
module attributes {stable_mosaic.version = 11 : i64} {
  func.func @_gnconv_fused_kernel(%arg0: i32, %arg1: memref<1x8x256xf32, #tpu.memory_space<vmem>>, %arg2: memref<512x144xbf16, #tpu.memory_space<vmem>>, %arg3: memref<288x256xbf16, #tpu.memory_space<vmem>>, %arg4: memref<16x144xf32, #tpu.memory_space<vmem>>, %arg5: memref<72x256xf32, #tpu.memory_space<vmem>>, %arg6: memref<64x8xf32, #tpu.memory_space<vmem>>, %arg7: memref<80x1xf32, #tpu.memory_space<vmem>>, %arg8: memref<1x8x256xf32, #tpu.memory_space<vmem>>) attributes {dimension_semantics = [#tpu.dimension_semantics<parallel>], iteration_bounds = array<i64: 2>, scalar_prefetch = 0 : i64, scratch_operands = 0 : i64, tpu.core_type = #tpu.core_type<tc>, window_params = [{transform_indices = @transform_0, window_bounds = array<i64: 1, 8, 256>}, {pipeline_mode = #tpu.pipeline_mode<synchronous>, transform_indices = @transform_1, window_bounds = array<i64: 512, 144>}, {pipeline_mode = #tpu.pipeline_mode<synchronous>, transform_indices = @transform_2, window_bounds = array<i64: 288, 256>}, {pipeline_mode = #tpu.pipeline_mode<synchronous>, transform_indices = @transform_3, window_bounds = array<i64: 16, 144>}, {pipeline_mode = #tpu.pipeline_mode<synchronous>, transform_indices = @transform_4, window_bounds = array<i64: 72, 256>}, {pipeline_mode = #tpu.pipeline_mode<synchronous>, transform_indices = @transform_5, window_bounds = array<i64: 64, 8>}, {pipeline_mode = #tpu.pipeline_mode<synchronous>, transform_indices = @transform_6, window_bounds = array<i64: 80, 1>}, {transform_indices = @transform_7, window_bounds = array<i64: 1, 8, 256>}]} {
    %c0 = arith.constant 0 : index
    %c0_0 = arith.constant 0 : index
    %c0_1 = arith.constant 0 : index
    %0 = vector.load %arg1[%c0, %c0_0, %c0_1] : memref<1x8x256xf32, #tpu.memory_space<vmem>>, vector<1x8x256xf32>
    %1 = vector.shape_cast %0 : vector<1x8x256xf32> to vector<8x256xf32>
    %c0_2 = arith.constant 0 : index
    %c0_3 = arith.constant 0 : index
    %2 = vector.load %arg6[%c0_2, %c0_3] : memref<64x8xf32, #tpu.memory_space<vmem>>, vector<24x8xf32>
    %c0_4 = arith.constant 0 : index
    %c0_5 = arith.constant 0 : index
    %3 = vector.load %arg7[%c0_4, %c0_5] : memref<80x1xf32, #tpu.memory_space<vmem>>, vector<24x1xf32>
    %cst = arith.constant dense<0.000000e+00> : vector<24x256xf32>
    %4 = tpu.matmul %2, %1, %cst {dimension_numbers = #tpu.dot_dimension_numbers<[1], [0], [0], [1], [0, 0, 1, 1], [], []>} : vector<24x8xf32>, vector<8x256xf32>, vector<24x256xf32> -> vector<24x256xf32>
    %5 = vector.broadcast %3 : vector<24x1xf32> to vector<24x256xf32>
    %6 = arith.addf %4, %5 : vector<24x256xf32>
    %7 = vector.extract_strided_slice %6 {offsets = [0, 0], sizes = [8, 256], strides = [1, 1]} : vector<24x256xf32> to vector<8x256xf32>
    %8 = vector.extract_strided_slice %6 {offsets = [8, 0], sizes = [8, 256], strides = [1, 1]} : vector<24x256xf32> to vector<8x256xf32>
    %9 = vector.extract_strided_slice %6 {offsets = [16, 0], sizes = [8, 256], strides = [1, 1]} : vector<24x256xf32> to vector<8x256xf32>
    %cst_6 = arith.constant dense<0.000000e+00> : vector<256xf32>
    %10 = vector.multi_reduction <add>, %7, %cst_6 [0] : vector<8x256xf32> to vector<256xf32>
    %11 = vector.shape_cast %10 : vector<256xf32> to vector<1x256xf32>
    %cst_7 = arith.constant dense<0.000000e+00> : vector<256xf32>
    %12 = vector.multi_reduction <add>, %8, %cst_7 [0] : vector<8x256xf32> to vector<256xf32>
    %13 = vector.shape_cast %12 : vector<256xf32> to vector<1x256xf32>
    %14 = arith.addf %11, %13 : vector<1x256xf32>
    %cst_8 = arith.constant 0.0833333358 : f32
    %15 = vector.broadcast %cst_8 : f32 to vector<1x256xf32>
    %16 = arith.mulf %14, %15 : vector<1x256xf32>
    %17 = vector.broadcast %16 : vector<1x256xf32> to vector<8x256xf32>
    %18 = arith.subf %7, %17 : vector<8x256xf32>
    %19 = vector.broadcast %16 : vector<1x256xf32> to vector<8x256xf32>
    %20 = arith.subf %8, %19 : vector<8x256xf32>
    %21 = arith.mulf %18, %18 : vector<8x256xf32>
    %cst_9 = arith.constant dense<0.000000e+00> : vector<256xf32>
    %22 = vector.multi_reduction <add>, %21, %cst_9 [0] : vector<8x256xf32> to vector<256xf32>
    %23 = vector.shape_cast %22 : vector<256xf32> to vector<1x256xf32>
    %24 = arith.mulf %20, %20 : vector<8x256xf32>
    %cst_10 = arith.constant dense<0.000000e+00> : vector<256xf32>
    %25 = vector.multi_reduction <add>, %24, %cst_10 [0] : vector<8x256xf32> to vector<256xf32>
    %26 = vector.shape_cast %25 : vector<256xf32> to vector<1x256xf32>
    %27 = arith.addf %23, %26 : vector<1x256xf32>
    %cst_11 = arith.constant 4.000000e+00 : f32
    %28 = vector.broadcast %cst_11 : f32 to vector<1x256xf32>
    %29 = arith.mulf %28, %16 : vector<1x256xf32>
    %30 = arith.mulf %29, %16 : vector<1x256xf32>
    %31 = arith.subf %27, %30 : vector<1x256xf32>
    %cst_12 = arith.constant 0.0833333358 : f32
    %32 = vector.broadcast %cst_12 : f32 to vector<1x256xf32>
    %33 = arith.mulf %31, %32 : vector<1x256xf32>
    %cst_13 = arith.constant 9.99999997E-7 : f32
    %34 = vector.broadcast %cst_13 : f32 to vector<1x256xf32>
    %35 = arith.addf %33, %34 : vector<1x256xf32>
    %36 = math.rsqrt %35 : vector<1x256xf32>
    %37 = vector.broadcast %36 : vector<1x256xf32> to vector<8x256xf32>
    %38 = arith.mulf %18, %37 : vector<8x256xf32>
    %c24 = arith.constant 24 : index
    %c0_14 = arith.constant 0 : index
    %39 = vector.load %arg7[%c24, %c0_14] : memref<80x1xf32, #tpu.memory_space<vmem>>, vector<8x1xf32>
    %40 = vector.broadcast %39 : vector<8x1xf32> to vector<8x256xf32>
    %41 = arith.mulf %38, %40 : vector<8x256xf32>
    %c32 = arith.constant 32 : index
    %c0_15 = arith.constant 0 : index
    %42 = vector.load %arg7[%c32, %c0_15] : memref<80x1xf32, #tpu.memory_space<vmem>>, vector<8x1xf32>
    %43 = vector.broadcast %42 : vector<8x1xf32> to vector<8x256xf32>
    %44 = arith.addf %41, %43 : vector<8x256xf32>
    %45 = vector.broadcast %36 : vector<1x256xf32> to vector<8x256xf32>
    %46 = arith.mulf %20, %45 : vector<8x256xf32>
    %c40 = arith.constant 40 : index
    %c0_16 = arith.constant 0 : index
    %47 = vector.load %arg7[%c40, %c0_16] : memref<80x1xf32, #tpu.memory_space<vmem>>, vector<8x1xf32>
    %48 = vector.broadcast %47 : vector<8x1xf32> to vector<8x256xf32>
    %49 = arith.mulf %46, %48 : vector<8x256xf32>
    %c48 = arith.constant 48 : index
    %c0_17 = arith.constant 0 : index
    %50 = vector.load %arg7[%c48, %c0_17] : memref<80x1xf32, #tpu.memory_space<vmem>>, vector<8x1xf32>
    %51 = vector.broadcast %50 : vector<8x1xf32> to vector<8x256xf32>
    %52 = arith.addf %49, %51 : vector<8x256xf32>
    %c32_18 = arith.constant 32 : index
    %c0_19 = arith.constant 0 : index
    %53 = vector.load %arg5[%c32_18, %c0_19] : memref<72x256xf32, #tpu.memory_space<vmem>>, vector<8x256xf32>
    %54 = arith.mulf %53, %44 : vector<8x256xf32>
    %c17_i32 = arith.constant 17 : i32
    %55 = tpu.dynamic_rotate %44 by %c17_i32 dim 1 : vector<8x256xf32>, i32 -> vector<8x256xf32>
    %c0_20 = arith.constant 0 : index
    %c0_21 = arith.constant 0 : index
    %56 = vector.load %arg5[%c0_20, %c0_21] : memref<72x256xf32, #tpu.memory_space<vmem>>, vector<8x256xf32>
    %57 = arith.mulf %56, %55 : vector<8x256xf32>
    %58 = arith.addf %54, %57 : vector<8x256xf32>
    %c16_i32 = arith.constant 16 : i32
    %59 = tpu.dynamic_rotate %44 by %c16_i32 dim 1 : vector<8x256xf32>, i32 -> vector<8x256xf32>
    %c8 = arith.constant 8 : index
    %c0_22 = arith.constant 0 : index
    %60 = vector.load %arg5[%c8, %c0_22] : memref<72x256xf32, #tpu.memory_space<vmem>>, vector<8x256xf32>
    %61 = arith.mulf %60, %59 : vector<8x256xf32>
    %62 = arith.addf %58, %61 : vector<8x256xf32>
    %c15_i32 = arith.constant 15 : i32
    %63 = tpu.dynamic_rotate %44 by %c15_i32 dim 1 : vector<8x256xf32>, i32 -> vector<8x256xf32>
    %c16 = arith.constant 16 : index
    %c0_23 = arith.constant 0 : index
    %64 = vector.load %arg5[%c16, %c0_23] : memref<72x256xf32, #tpu.memory_space<vmem>>, vector<8x256xf32>
    %65 = arith.mulf %64, %63 : vector<8x256xf32>
    %66 = arith.addf %62, %65 : vector<8x256xf32>
    %c1_i32 = arith.constant 1 : i32
    %67 = tpu.dynamic_rotate %44 by %c1_i32 dim 1 : vector<8x256xf32>, i32 -> vector<8x256xf32>
    %c24_24 = arith.constant 24 : index
    %c0_25 = arith.constant 0 : index
    %68 = vector.load %arg5[%c24_24, %c0_25] : memref<72x256xf32, #tpu.memory_space<vmem>>, vector<8x256xf32>
    %69 = arith.mulf %68, %67 : vector<8x256xf32>
    %70 = arith.addf %66, %69 : vector<8x256xf32>
    %c255_i32 = arith.constant 255 : i32
    %71 = tpu.dynamic_rotate %44 by %c255_i32 dim 1 : vector<8x256xf32>, i32 -> vector<8x256xf32>
    %c40_26 = arith.constant 40 : index
    %c0_27 = arith.constant 0 : index
    %72 = vector.load %arg5[%c40_26, %c0_27] : memref<72x256xf32, #tpu.memory_space<vmem>>, vector<8x256xf32>
    %73 = arith.mulf %72, %71 : vector<8x256xf32>
    %74 = arith.addf %70, %73 : vector<8x256xf32>
    %c241_i32 = arith.constant 241 : i32
    %75 = tpu.dynamic_rotate %44 by %c241_i32 dim 1 : vector<8x256xf32>, i32 -> vector<8x256xf32>
    %c48_28 = arith.constant 48 : index
    %c0_29 = arith.constant 0 : index
    %76 = vector.load %arg5[%c48_28, %c0_29] : memref<72x256xf32, #tpu.memory_space<vmem>>, vector<8x256xf32>
    %77 = arith.mulf %76, %75 : vector<8x256xf32>
    %78 = arith.addf %74, %77 : vector<8x256xf32>
    %c240_i32 = arith.constant 240 : i32
    %79 = tpu.dynamic_rotate %44 by %c240_i32 dim 1 : vector<8x256xf32>, i32 -> vector<8x256xf32>
    %c56 = arith.constant 56 : index
    %c0_30 = arith.constant 0 : index
    %80 = vector.load %arg5[%c56, %c0_30] : memref<72x256xf32, #tpu.memory_space<vmem>>, vector<8x256xf32>
    %81 = arith.mulf %80, %79 : vector<8x256xf32>
    %82 = arith.addf %78, %81 : vector<8x256xf32>
    %c239_i32 = arith.constant 239 : i32
    %83 = tpu.dynamic_rotate %44 by %c239_i32 dim 1 : vector<8x256xf32>, i32 -> vector<8x256xf32>
    %c64 = arith.constant 64 : index
    %c0_31 = arith.constant 0 : index
    %84 = vector.load %arg5[%c64, %c0_31] : memref<72x256xf32, #tpu.memory_space<vmem>>, vector<8x256xf32>
    %85 = arith.mulf %84, %83 : vector<8x256xf32>
    %86 = arith.addf %82, %85 : vector<8x256xf32>
    %87 = arith.truncf %52 : vector<8x256xf32> to vector<8x256xbf16>
    %c0_32 = arith.constant 0 : index
    %c0_33 = arith.constant 0 : index
    %88 = vector.load %arg2[%c0_32, %c0_33] : memref<512x144xbf16, #tpu.memory_space<vmem>>, vector<256x144xbf16>
    %cst_34 = arith.constant dense<0.000000e+00> : vector<8x144xf32>
    %89 = tpu.matmul %87, %88, %cst_34 {dimension_numbers = #tpu.dot_dimension_numbers<[1], [0], [0], [1], [0, 0, 1, 1], [], []>} : vector<8x256xbf16>, vector<256x144xbf16>, vector<8x144xf32> -> vector<8x144xf32>
    %c256 = arith.constant 256 : index
    %c0_35 = arith.constant 0 : index
    %90 = vector.load %arg2[%c256, %c0_35] : memref<512x144xbf16, #tpu.memory_space<vmem>>, vector<256x144xbf16>
    %cst_36 = arith.constant dense<0.000000e+00> : vector<8x144xf32>
    %91 = tpu.matmul %87, %90, %cst_36 {dimension_numbers = #tpu.dot_dimension_numbers<[1], [0], [0], [1], [0, 0, 1, 1], [], []>} : vector<8x256xbf16>, vector<256x144xbf16>, vector<8x144xf32> -> vector<8x144xf32>
    %c0_37 = arith.constant 0 : index
    %c0_38 = arith.constant 0 : index
    %92 = vector.load %arg4[%c0_37, %c0_38] : memref<16x144xf32, #tpu.memory_space<vmem>>, vector<8x144xf32>
    %c8_39 = arith.constant 8 : index
    %c0_40 = arith.constant 0 : index
    %93 = vector.load %arg4[%c8_39, %c0_40] : memref<16x144xf32, #tpu.memory_space<vmem>>, vector<8x144xf32>
    %94 = arith.mulf %89, %92 : vector<8x144xf32>
    %95 = arith.mulf %91, %93 : vector<8x144xf32>
    %96 = arith.subf %94, %95 : vector<8x144xf32>
    %97 = arith.truncf %96 : vector<8x144xf32> to vector<8x144xbf16>
    %98 = arith.mulf %89, %93 : vector<8x144xf32>
    %99 = arith.mulf %91, %92 : vector<8x144xf32>
    %100 = arith.addf %98, %99 : vector<8x144xf32>
    %101 = arith.truncf %100 : vector<8x144xf32> to vector<8x144xbf16>
    %c0_41 = arith.constant 0 : index
    %c0_42 = arith.constant 0 : index
    %102 = vector.load %arg3[%c0_41, %c0_42] : memref<288x256xbf16, #tpu.memory_space<vmem>>, vector<144x256xbf16>
    %cst_43 = arith.constant dense<0.000000e+00> : vector<8x256xf32>
    %103 = tpu.matmul %97, %102, %cst_43 {dimension_numbers = #tpu.dot_dimension_numbers<[1], [0], [0], [1], [0, 0, 1, 1], [], []>} : vector<8x144xbf16>, vector<144x256xbf16>, vector<8x256xf32> -> vector<8x256xf32>
    %c144 = arith.constant 144 : index
    %c0_44 = arith.constant 0 : index
    %104 = vector.load %arg3[%c144, %c0_44] : memref<288x256xbf16, #tpu.memory_space<vmem>>, vector<144x256xbf16>
    %cst_45 = arith.constant dense<0.000000e+00> : vector<8x256xf32>
    %105 = tpu.matmul %101, %104, %cst_45 {dimension_numbers = #tpu.dot_dimension_numbers<[1], [0], [0], [1], [0, 0, 1, 1], [], []>} : vector<8x144xbf16>, vector<144x256xbf16>, vector<8x256xf32> -> vector<8x256xf32>
    %106 = arith.subf %103, %105 : vector<8x256xf32>
    %cst_46 = arith.constant dense<0.000000e+00> : vector<256xf32>
    %107 = vector.multi_reduction <add>, %86, %cst_46 [0] : vector<8x256xf32> to vector<256xf32>
    %108 = vector.shape_cast %107 : vector<256xf32> to vector<1x256xf32>
    %cst_47 = arith.constant dense<0.000000e+00> : vector<256xf32>
    %109 = vector.multi_reduction <add>, %106, %cst_47 [0] : vector<8x256xf32> to vector<256xf32>
    %110 = vector.shape_cast %109 : vector<256xf32> to vector<1x256xf32>
    %111 = arith.addf %108, %110 : vector<1x256xf32>
    %cst_48 = arith.constant 0.0833333358 : f32
    %112 = vector.broadcast %cst_48 : f32 to vector<1x256xf32>
    %113 = arith.mulf %111, %112 : vector<1x256xf32>
    %114 = vector.broadcast %113 : vector<1x256xf32> to vector<8x256xf32>
    %115 = arith.subf %86, %114 : vector<8x256xf32>
    %116 = vector.broadcast %113 : vector<1x256xf32> to vector<8x256xf32>
    %117 = arith.subf %106, %116 : vector<8x256xf32>
    %118 = arith.mulf %115, %115 : vector<8x256xf32>
    %cst_49 = arith.constant dense<0.000000e+00> : vector<256xf32>
    %119 = vector.multi_reduction <add>, %118, %cst_49 [0] : vector<8x256xf32> to vector<256xf32>
    %120 = vector.shape_cast %119 : vector<256xf32> to vector<1x256xf32>
    %121 = arith.mulf %117, %117 : vector<8x256xf32>
    %cst_50 = arith.constant dense<0.000000e+00> : vector<256xf32>
    %122 = vector.multi_reduction <add>, %121, %cst_50 [0] : vector<8x256xf32> to vector<256xf32>
    %123 = vector.shape_cast %122 : vector<256xf32> to vector<1x256xf32>
    %124 = arith.addf %120, %123 : vector<1x256xf32>
    %cst_51 = arith.constant 4.000000e+00 : f32
    %125 = vector.broadcast %cst_51 : f32 to vector<1x256xf32>
    %126 = arith.mulf %125, %113 : vector<1x256xf32>
    %127 = arith.mulf %126, %113 : vector<1x256xf32>
    %128 = arith.subf %124, %127 : vector<1x256xf32>
    %cst_52 = arith.constant 0.0833333358 : f32
    %129 = vector.broadcast %cst_52 : f32 to vector<1x256xf32>
    %130 = arith.mulf %128, %129 : vector<1x256xf32>
    %cst_53 = arith.constant 9.99999997E-7 : f32
    %131 = vector.broadcast %cst_53 : f32 to vector<1x256xf32>
    %132 = arith.addf %130, %131 : vector<1x256xf32>
    %133 = math.rsqrt %132 : vector<1x256xf32>
    %134 = vector.broadcast %133 : vector<1x256xf32> to vector<8x256xf32>
    %135 = arith.mulf %115, %134 : vector<8x256xf32>
    %136 = vector.broadcast %133 : vector<1x256xf32> to vector<8x256xf32>
    %137 = arith.mulf %117, %136 : vector<8x256xf32>
    %c32_54 = arith.constant 32 : index
    %c0_55 = arith.constant 0 : index
    %138 = vector.load %arg6[%c32_54, %c0_55] : memref<64x8xf32, #tpu.memory_space<vmem>>, vector<16x8xf32>
    %c48_56 = arith.constant 48 : index
    %c0_57 = arith.constant 0 : index
    %139 = vector.load %arg6[%c48_56, %c0_57] : memref<64x8xf32, #tpu.memory_space<vmem>>, vector<16x8xf32>
    %c56_58 = arith.constant 56 : index
    %c0_59 = arith.constant 0 : index
    %140 = vector.load %arg7[%c56_58, %c0_59] : memref<80x1xf32, #tpu.memory_space<vmem>>, vector<16x1xf32>
    %cst_60 = arith.constant dense<0.000000e+00> : vector<16x256xf32>
    %141 = tpu.matmul %138, %135, %cst_60 {dimension_numbers = #tpu.dot_dimension_numbers<[1], [0], [0], [1], [0, 0, 1, 1], [], []>} : vector<16x8xf32>, vector<8x256xf32>, vector<16x256xf32> -> vector<16x256xf32>
    %cst_61 = arith.constant dense<0.000000e+00> : vector<16x256xf32>
    %142 = tpu.matmul %139, %137, %cst_61 {dimension_numbers = #tpu.dot_dimension_numbers<[1], [0], [0], [1], [0, 0, 1, 1], [], []>} : vector<16x8xf32>, vector<8x256xf32>, vector<16x256xf32> -> vector<16x256xf32>
    %143 = arith.addf %141, %142 : vector<16x256xf32>
    %144 = vector.broadcast %140 : vector<16x1xf32> to vector<16x256xf32>
    %145 = arith.addf %143, %144 : vector<16x256xf32>
    %146 = vector.extract_strided_slice %145 {offsets = [0, 0], sizes = [8, 256], strides = [1, 1]} : vector<16x256xf32> to vector<8x256xf32>
    %147 = vector.extract_strided_slice %145 {offsets = [8, 0], sizes = [8, 256], strides = [1, 1]} : vector<16x256xf32> to vector<8x256xf32>
    %c24_62 = arith.constant 24 : index
    %c0_63 = arith.constant 0 : index
    %148 = vector.load %arg6[%c24_62, %c0_63] : memref<64x8xf32, #tpu.memory_space<vmem>>, vector<8x8xf32>
    %c72 = arith.constant 72 : index
    %c0_64 = arith.constant 0 : index
    %149 = vector.load %arg7[%c72, %c0_64] : memref<80x1xf32, #tpu.memory_space<vmem>>, vector<8x1xf32>
    %150 = arith.mulf %9, %146 : vector<8x256xf32>
    %cst_65 = arith.constant dense<0.000000e+00> : vector<8x256xf32>
    %151 = tpu.matmul %148, %150, %cst_65 {dimension_numbers = #tpu.dot_dimension_numbers<[1], [0], [0], [1], [0, 0, 1, 1], [], []>} : vector<8x8xf32>, vector<8x256xf32>, vector<8x256xf32> -> vector<8x256xf32>
    %152 = vector.broadcast %149 : vector<8x1xf32> to vector<8x256xf32>
    %153 = arith.addf %151, %152 : vector<8x256xf32>
    %154 = arith.mulf %153, %147 : vector<8x256xf32>
    %c0_66 = arith.constant 0 : index
    %c0_67 = arith.constant 0 : index
    %c0_68 = arith.constant 0 : index
    %155 = vector.load %arg8[%c0_66, %c0_67, %c0_68] : memref<1x8x256xf32, #tpu.memory_space<vmem>>, vector<1x8x256xf32>
    %156 = vector.shape_cast %155 : vector<1x8x256xf32> to vector<8x256xf32>
    %157 = vector.shape_cast %154 : vector<8x256xf32> to vector<1x8x256xf32>
    tpu.vector_store %arg8[%c0_66, %c0_67, %c0_68], %157 {strides = array<i32>} : memref<1x8x256xf32, #tpu.memory_space<vmem>>, vector<1x8x256xf32>,
    return
  }
  func.func @transform_0(%arg0: i32) -> (i32, i32, i32) {
    %c0_i32 = arith.constant 0 : i32
    %c0_i32_0 = arith.constant 0 : i32
    %c0_i32_1 = arith.constant 0 : i32
    return %arg0, %c0_i32, %c0_i32_0 : i32, i32, i32
  }
  func.func @transform_1(%arg0: i32) -> (i32, i32) {
    %c0_i32 = arith.constant 0 : i32
    %c0_i32_0 = arith.constant 0 : i32
    %c0_i32_1 = arith.constant 0 : i32
    return %c0_i32, %c0_i32_0 : i32, i32
  }
  func.func @transform_2(%arg0: i32) -> (i32, i32) {
    %c0_i32 = arith.constant 0 : i32
    %c0_i32_0 = arith.constant 0 : i32
    %c0_i32_1 = arith.constant 0 : i32
    return %c0_i32, %c0_i32_0 : i32, i32
  }
  func.func @transform_3(%arg0: i32) -> (i32, i32) {
    %c0_i32 = arith.constant 0 : i32
    %c0_i32_0 = arith.constant 0 : i32
    %c0_i32_1 = arith.constant 0 : i32
    return %c0_i32, %c0_i32_0 : i32, i32
  }
  func.func @transform_4(%arg0: i32) -> (i32, i32) {
    %c0_i32 = arith.constant 0 : i32
    %c0_i32_0 = arith.constant 0 : i32
    %c0_i32_1 = arith.constant 0 : i32
    return %c0_i32, %c0_i32_0 : i32, i32
  }
  func.func @transform_5(%arg0: i32) -> (i32, i32) {
    %c0_i32 = arith.constant 0 : i32
    %c0_i32_0 = arith.constant 0 : i32
    %c0_i32_1 = arith.constant 0 : i32
    return %c0_i32, %c0_i32_0 : i32, i32
  }
  func.func @transform_6(%arg0: i32) -> (i32, i32) {
    %c0_i32 = arith.constant 0 : i32
    %c0_i32_0 = arith.constant 0 : i32
    %c0_i32_1 = arith.constant 0 : i32
    return %c0_i32, %c0_i32_0 : i32, i32
  }
  func.func @transform_7(%arg0: i32) -> (i32, i32, i32) {
    %c0_i32 = arith.constant 0 : i32
    %c0_i32_0 = arith.constant 0 : i32
    %c0_i32_1 = arith.constant 0 : i32
    return %arg0, %c0_i32, %c0_i32_0 : i32, i32, i32
  }
}

</mosaic_0001>

<llo_original>
// kernel: gnconv_forward.1
$region0: #{gnconv_forward.1}
  #allocation0 [shape = 'u32[]', space=smem, size = 0x4, offset = 0x4, fixed_abs, tag = 'smem constant byte address 0x4 - core index']
  #allocation1 [shape = 'u32[144,128]{1,0:T(1,128)}', space=vmem, size = 0x12000, scoped, tag = 'internal scratch']
  %s0 = inlined_call_operand.vmem [shape: f32[2,8,256], index: 0, kind: input, shape index: {}]
  %s1 = inlined_call_operand.vmem [shape: bf16[512,144], index: 1, kind: input, shape index: {}]
  %s2 = inlined_call_operand.vmem [shape: bf16[288,256], index: 2, kind: input, shape index: {}]
  %s3 = inlined_call_operand.vmem [shape: f32[16,144], index: 3, kind: input, shape index: {}]
  %s4 = inlined_call_operand.vmem [shape: f32[72,256], index: 4, kind: input, shape index: {}]
  %s5 = inlined_call_operand.vmem [shape: f32[64,8], index: 5, kind: input, shape index: {}]
  %s6 = inlined_call_operand.vmem [shape: f32[80,1], index: 6, kind: input, shape index: {}]
  %s7 = inlined_call_operand.vmem [shape: f32[2,8,256], index: 7, kind: output, shape index: {}]
  %s8 = sld [smem:[#allocation0]]
  $region61: #{gnconv_forward.1} parent=0
    _
  %s10 = ssub.s32 1, %s8
  %s11 = scalar_select 0, %s10, %s8
  loop: start=0, step=1, limit=4
  $region2: #{gnconv_forward.1} parent=0 // loop_pre_header
    _
  $region3: #{gnconv_forward.1} parent=0 // loop_header
    %s13 = sphi 0, %s17
    %p14 = scmp.ge.s32.totalorder %s13, 4
    %s23 = sphi 0, %s25
    %s26 = sphi 0, %s23
    %s27 = sphi 0, %s26
    %s43 = sphi 0, %s27
    %s47 = sphi 0, %s47
    %s49 = sphi 0, %s47
    %s50 = sphi 0, %s49
    %s64 = sphi 0, %s50
    %s68 = sphi 0, %s68
    %s70 = sphi 0, %s68
    %s71 = sphi 0, %s70
    %s85 = sphi 0, %s71
    %s89 = sphi 0, %s89
    %s91 = sphi 0, %s89
    %s92 = sphi 0, %s91
    %s106 = sphi 0, %s92
    %s110 = sphi 0, %s110
    %s112 = sphi 0, %s110
    %s113 = sphi 0, %s112
    %s127 = sphi 0, %s113
    %s131 = sphi 0, %s131
    %s133 = sphi 0, %s131
    %s134 = sphi 0, %s133
    %s148 = sphi 0, %s134
    %s152 = sphi 0, %s152
    %s154 = sphi 0, %s152
    %s155 = sphi 0, %s154
    %s169 = sphi 0, %s155
    %s175 = sphi 0, %s177
    %s178 = sphi 0, %s175
    %s179 = sphi 0, %s178
    %s195 = sphi 0, %s179
  $region4: #{gnconv_forward.1} parent=0 // loop_header_branch
    %16 = sbr.rel (%p14) target = $region8
  $region5: #{gnconv_forward.1} parent=0 // loop_body
    %s18 = ssub.s32 %s13, 1
    %s19 = ssub.s32 %s13, 2
    %s20 = sadd.s32 %s13, 1
    %s21 = ssub.s32 %s13, %s20
    %p22 = scmp.eq.s32.totalorder %s21, 0
    %s24 = sadd.s32 %s23, 1
    %s25 = scalar_select %p22, %s23, %s24
    %p28 = pneg %p22
    %p29 = scmp.eq.s32.totalorder %s13, 1
    %p30 = por %p28, %p29
    %p31 = scmp.ne.s32.totalorder %s23, %s26
    %p32 = scmp.eq.s32.totalorder %s13, 0
    %p33 = por %p31, %p32
    %p34 = scmp.ne.s32.totalorder %s23, %s26
    %p35 = scmp.eq.s32.totalorder %s18, 1
    %p36 = por %p34, %p35
    %p37 = scmp.ne.s32.totalorder %s26, %s27
    %p38 = scmp.eq.s32.totalorder %s18, 0
    %p39 = por %p37, %p38
    %p40 = scmp.ne.s32.totalorder %s26, %s27
    %p41 = scmp.eq.s32.totalorder %s19, 1
    %p42 = por %p40, %p41
    %p44 = scmp.ne.s32.totalorder %s27, %s43
    %p45 = scmp.eq.s32.totalorder %s19, 0
    %p46 = por %p44, %p45
    %s48 = sadd.s32 %s47, 1
    %p51 = scmp.eq.s32.totalorder %s13, 1
    %p52 = scmp.ne.s32.totalorder %s47, %s49
    %p53 = scmp.eq.s32.totalorder %s13, 0
    %p54 = por %p52, %p53
    %p55 = scmp.ne.s32.totalorder %s47, %s49
    %p56 = scmp.eq.s32.totalorder %s18, 1
    %p57 = por %p55, %p56
    %p58 = scmp.ne.s32.totalorder %s49, %s50
    %p59 = scmp.eq.s32.totalorder %s18, 0
    %p60 = por %p58, %p59
    %p61 = scmp.ne.s32.totalorder %s49, %s50
    %p62 = scmp.eq.s32.totalorder %s19, 1
    %p63 = por %p61, %p62
    %p65 = scmp.ne.s32.totalorder %s50, %s64
    %p66 = scmp.eq.s32.totalorder %s19, 0
    %p67 = por %p65, %p66
    %s69 = sadd.s32 %s68, 1
    %p72 = scmp.eq.s32.totalorder %s13, 1
    %p73 = scmp.ne.s32.totalorder %s68, %s70
    %p74 = scmp.eq.s32.totalorder %s13, 0
    %p75 = por %p73, %p74
    %p76 = scmp.ne.s32.totalorder %s68, %s70
    %p77 = scmp.eq.s32.totalorder %s18, 1
    %p78 = por %p76, %p77
    %p79 = scmp.ne.s32.totalorder %s70, %s71
    %p80 = scmp.eq.s32.totalorder %s18, 0
    %p81 = por %p79, %p80
    %p82 = scmp.ne.s32.totalorder %s70, %s71
    %p83 = scmp.eq.s32.totalorder %s19, 1
    %p84 = por %p82, %p83
    %p86 = scmp.ne.s32.totalorder %s71, %s85
    %p87 = scmp.eq.s32.totalorder %s19, 0
    %p88 = por %p86, %p87
    %s90 = sadd.s32 %s89, 1
    %p93 = scmp.eq.s32.totalorder %s13, 1
    %p94 = scmp.ne.s32.totalorder %s89, %s91
    %p95 = scmp.eq.s32.totalorder %s13, 0
    %p96 = por %p94, %p95
    %p97 = scmp.ne.s32.totalorder %s89, %s91
    %p98 = scmp.eq.s32.totalorder %s18, 1
    %p99 = por %p97, %p98
    %p100 = scmp.ne.s32.totalorder %s91, %s92
    %p101 = scmp.eq.s32.totalorder %s18, 0
    %p102 = por %p100, %p101
    %p103 = scmp.ne.s32.totalorder %s91, %s92
    %p104 = scmp.eq.s32.totalorder %s19, 1
    %p105 = por %p103, %p104
    %p107 = scmp.ne.s32.totalorder %s92, %s106
    %p108 = scmp.eq.s32.totalorder %s19, 0
    %p109 = por %p107, %p108
    %s111 = sadd.s32 %s110, 1
    %p114 = scmp.eq.s32.totalorder %s13, 1
    %p115 = scmp.ne.s32.totalorder %s110, %s112
    %p116 = scmp.eq.s32.totalorder %s13, 0
    %p117 = por %p115, %p116
    %p118 = scmp.ne.s32.totalorder %s110, %s112
    %p119 = scmp.eq.s32.totalorder %s18, 1
    %p120 = por %p118, %p119
    %p121 = scmp.ne.s32.totalorder %s112, %s113
    %p122 = scmp.eq.s32.totalorder %s18, 0
    %p123 = por %p121, %p122
    %p124 = scmp.ne.s32.totalorder %s112, %s113
    %p125 = scmp.eq.s32.totalorder %s19, 1
    %p126 = por %p124, %p125
    %p128 = scmp.ne.s32.totalorder %s113, %s127
    %p129 = scmp.eq.s32.totalorder %s19, 0
    %p130 = por %p128, %p129
    %s132 = sadd.s32 %s131, 1
    %p135 = scmp.eq.s32.totalorder %s13, 1
    %p136 = scmp.ne.s32.totalorder %s131, %s133
    %p137 = scmp.eq.s32.totalorder %s13, 0
    %p138 = por %p136, %p137
    %p139 = scmp.ne.s32.totalorder %s131, %s133
    %p140 = scmp.eq.s32.totalorder %s18, 1
    %p141 = por %p139, %p140
    %p142 = scmp.ne.s32.totalorder %s133, %s134
    %p143 = scmp.eq.s32.totalorder %s18, 0
    %p144 = por %p142, %p143
    %p145 = scmp.ne.s32.totalorder %s133, %s134
    %p146 = scmp.eq.s32.totalorder %s19, 1
    %p147 = por %p145, %p146
    %p149 = scmp.ne.s32.totalorder %s134, %s148
    %p150 = scmp.eq.s32.totalorder %s19, 0
    %p151 = por %p149, %p150
    %s153 = sadd.s32 %s152, 1
    %p156 = scmp.eq.s32.totalorder %s13, 1
    %p157 = scmp.ne.s32.totalorder %s152, %s154
    %p158 = scmp.eq.s32.totalorder %s13, 0
    %p159 = por %p157, %p158
    %p160 = scmp.ne.s32.totalorder %s152, %s154
    %p161 = scmp.eq.s32.totalorder %s18, 1
    %p162 = por %p160, %p161
    %p163 = scmp.ne.s32.totalorder %s154, %s155
    %p164 = scmp.eq.s32.totalorder %s18, 0
    %p165 = por %p163, %p164
    %p166 = scmp.ne.s32.totalorder %s154, %s155
    %p167 = scmp.eq.s32.totalorder %s19, 1
    %p168 = por %p166, %p167
    %p170 = scmp.ne.s32.totalorder %s155, %s169
    %p171 = scmp.eq.s32.totalorder %s19, 0
    %p172 = por %p170, %p171
    %s173 = ssub.s32 %s13, %s20
    %p174 = scmp.eq.s32.totalorder %s173, 0
    %s176 = sadd.s32 %s175, 1
    %s177 = scalar_select %p174, %s175, %s176
    %p180 = pneg %p174
    %p181 = scmp.eq.s32.totalorder %s13, 1
    %p182 = por %p180, %p181
    %p183 = scmp.ne.s32.totalorder %s175, %s178
    %p184 = scmp.eq.s32.totalorder %s13, 0
    %p185 = por %p183, %p184
    %p186 = scmp.ne.s32.totalorder %s175, %s178
    %p187 = scmp.eq.s32.totalorder %s18, 1
    %p188 = por %p186, %p187
    %p189 = scmp.ne.s32.totalorder %s178, %s179
    %p190 = scmp.eq.s32.totalorder %s18, 0
    %p191 = por %p189, %p190
    %p192 = scmp.ne.s32.totalorder %s178, %s179
    %p193 = scmp.eq.s32.totalorder %s19, 1
    %p194 = por %p192, %p193
    %p196 = scmp.ne.s32.totalorder %s179, %s195
    %p197 = scmp.eq.s32.totalorder %s19, 0
    %p198 = por %p196, %p197
    %p199 = scmp.le.s32.totalorder 1, %s13
    %p200 = scmp.lt.s32.totalorder %s13, 3
    %p201 = pnand %p199, %p200
    %p202 = pneg %p201
    // Predicated region
    $region9: #{gnconv_forward.1} parent=5 // pred_check
      _
    $region10: #{gnconv_forward.1} parent=5 // pred_check_branch
      %204 = sbr.rel (%p201) target = $region12
    $region11: #{gnconv_forward.1} parent=5 // pred_region
      %s205 = ssub.s32 %s13, 1
      // Predicated region
      $region13: #{gnconv_forward.1} parent=11 // pred_check
        %p206 = pneg %p60
      $region14: #{gnconv_forward.1} parent=11 // pred_check_branch
        %208 = sbr.rel (%p206) target = $region16
      $region15: #{gnconv_forward.1} parent=11 // pred_region
        _
      $region16: #{gnconv_forward.1} parent=11 // pred_fallthru
        _
      // Predicated region
      $region17: #{gnconv_forward.1} parent=11 // pred_check
        %p209 = pneg %p81
      $region18: #{gnconv_forward.1} parent=11 // pred_check_branch
        %211 = sbr.rel (%p209) target = $region20
      $region19: #{gnconv_forward.1} parent=11 // pred_region
        _
      $region20: #{gnconv_forward.1} parent=11 // pred_fallthru
        _
      // Predicated region
      $region21: #{gnconv_forward.1} parent=11 // pred_check
        %p212 = pneg %p102
      $region22: #{gnconv_forward.1} parent=11 // pred_check_branch
        %214 = sbr.rel (%p212) target = $region24
      $region23: #{gnconv_forward.1} parent=11 // pred_region
        _
      $region24: #{gnconv_forward.1} parent=11 // pred_fallthru
        _
      // Predicated region
      $region25: #{gnconv_forward.1} parent=11 // pred_check
        %p215 = pneg %p123
      $region26: #{gnconv_forward.1} parent=11 // pred_check_branch
        %217 = sbr.rel (%p215) target = $region28
      $region27: #{gnconv_forward.1} parent=11 // pred_region
        _
      $region28: #{gnconv_forward.1} parent=11 // pred_fallthru
        _
      // Predicated region
      $region29: #{gnconv_forward.1} parent=11 // pred_check
        %p218 = pneg %p144
      $region30: #{gnconv_forward.1} parent=11 // pred_check_branch
        %220 = sbr.rel (%p218) target = $region32
      $region31: #{gnconv_forward.1} parent=11 // pred_region
        _
      $region32: #{gnconv_forward.1} parent=11 // pred_fallthru
        _
      // Predicated region
      $region33: #{gnconv_forward.1} parent=11 // pred_check
        %p221 = pneg %p165
      $region34: #{gnconv_forward.1} parent=11 // pred_check_branch
        %223 = sbr.rel (%p221) target = $region36
      $region35: #{gnconv_forward.1} parent=11 // pred_region
        _
      $region36: #{gnconv_forward.1} parent=11 // pred_fallthru
        _
    $region12: #{gnconv_forward.1} parent=5 // pred_fallthru
      _
    %p224 = scmp.lt.s32.totalorder %s13, 2
    // Predicated region
    $region37: #{gnconv_forward.1} parent=5 // pred_check
      %p225 = pneg %p224
    $region38: #{gnconv_forward.1} parent=5 // pred_check_branch
      %227 = sbr.rel (%p225) target = $region40
    $region39: #{gnconv_forward.1} parent=5 // pred_region
      // Predicated region
      $region41: #{gnconv_forward.1} parent=39 // pred_check
        %p228 = pneg %p33
      $region42: #{gnconv_forward.1} parent=39 // pred_check_branch
        %230 = sbr.rel (%p228) target = $region44
      $region43: #{gnconv_forward.1} parent=39 // pred_region
        %p231 = scmp.lt.s32.totalorder %s13, 1
        %s232 = scalar_select %p231, %s13, 1
        %s233 = smul.addr %s232, 2
        %s234 = smul.addr %s233, 8
        %s235 = scalar_lea.vmem %s0, %s234
      $region44: #{gnconv_forward.1} parent=39 // pred_fallthru
        _
    $region40: #{gnconv_forward.1} parent=5 // pred_fallthru
      _
    %p236 = scmp.le.s32.totalorder 1, %s13
    %p237 = scmp.lt.s32.totalorder %s13, 3
    %p238 = pnand %p236, %p237
    %p239 = pneg %p238
    // Predicated region
    $region45: #{gnconv_forward.1} parent=5 // pred_check
      _
    $region46: #{gnconv_forward.1} parent=5 // pred_check_branch
      %241 = sbr.rel (%p238) target = $region48
    $region47: #{gnconv_forward.1} parent=5 // pred_region
      %s242 = ssub.s32 %s13, 1
      %p243 = scmp.lt.s32.totalorder %s18, 1
      %s244 = scalar_select %p243, %s18, 1
      %s245 = smul.addr %s244, 2
      %s246 = smul.addr %s245, 8
      %s247 = scalar_lea.vmem %s0, %s246
      %p248 = pneg %p39
      %p249 = pneg %p36
      %p250 = pneg %p60
      %p251 = pneg %p57
      %p252 = pneg %p81
      %p253 = pneg %p78
      %p254 = pneg %p102
      %p255 = pneg %p99
      %p256 = pneg %p123
      %p257 = pneg %p120
      %p258 = pneg %p144
      %p259 = pneg %p141
      %p260 = pneg %p165
      %p261 = pneg %p162
      %p262 = pneg %p191
      %p263 = pneg %p188
      %p264 = scmp.lt.s32.totalorder %s18, 1
      %s265 = scalar_select %p264, %s18, 1
      %s266 = smul.addr %s265, 2
      %s267 = smul.addr %s266, 8
      %s268 = scalar_lea.vmem %s7, %s267
      %p269 = scmp.lt.s32.totalorder %s18, 1
      %s270 = scalar_select %p269, %s18, 1
      %s271 = smul.addr %s270, 2
      %s272 = smul.addr %s271, 8
      %s273 = scalar_lea.vmem %s0, %s272
      %p274 = scmp.lt.s32.totalorder %s18, 1
      %s275 = scalar_select %p274, %s18, 1
      %s276 = smul.addr %s275, 2
      %s277 = smul.addr %s276, 8
      %s278 = scalar_lea.vmem %s7, %s277
      %v280 = vld [vmem:[%s273] sm:$0xff]
      %v281 = vld [vmem:[%s273 + $0x8] sm:$0xff]
      %v282 = vld [vmem:[%s5] sm:$0xff]
      %v283 = vld [vmem:[%s5 + $0x8] sm:$0xff]
      %v284 = vld [vmem:[%s5 + $0x10] sm:$0xff]
      %v285 = vld [vmem:[%s6] sm:$0xff]
      %v286 = vld [vmem:[%s6 + $0x8] sm:$0xff]
      %v287 = vld [vmem:[%s6 + $0x10] sm:$0xff]
      %289 = vset.pattern.permute.xlu0 0
      %290 = vperm.xlu0 %289, %v285
      %v291 = vpop.permute.xlu0 %290
      %294 = vset.pattern.permute.xlu0 0
      %295 = vperm.xlu0 %294, %v286
      %v296 = vpop.permute.xlu0 %295
      %299 = vset.pattern.permute.xlu0 0
      %300 = vperm.xlu0 %299, %v287
      %v301 = vpop.permute.xlu0 %300
      %vm303 = vcmask 64512
      %v305 = vsel %vm303, %v282, 0
      %v308 = vsel %vm303, %v283, 0
      %v311 = vsel %vm303, %v284, 0
      %313 = vmatprep.subr.mxu0 %v281
      %314 = vmatpush1.msra.mxu0 %v280
      %315 = vmatprep.subr.mxu0 0.0
      %316 = vmatpush1.msra.mxu0 0.0
      %317 = vmatprep.subr.mxu0 0.0
      %318 = vmatpush1.msra.mxu0 0.0
      %319 = vmatprep.subr.mxu0 0.0
      %320 = vmatpush1.msra.mxu0 0.0
      %321 = vmatprep.subr.mxu0 0.0
      %322 = vmatpush1.msra.mxu0 0.0
      %323 = vmatprep.subr.mxu0 0.0
      %324 = vmatpush1.msra.mxu0 0.0
      %325 = vmatprep.subr.mxu0 0.0
      %326 = vmatpush1.msra.mxu0 0.0
      %327 = vmatprep.subr.mxu0 0.0
      %328 = vmatpush1.msra.mxu0 0.0
      %329 = vmatprep.subr.mxu0 0.0
      %330 = vmatpush1.msra.mxu0 0.0
      %331 = vmatprep.subr.mxu0 0.0
      %332 = vmatpush1.msra.mxu0 0.0
      %333 = vmatprep.subr.mxu0 0.0
      %334 = vmatpush1.msra.mxu0 0.0
      %335 = vmatprep.subr.mxu0 0.0
      %336 = vmatpush1.msra.mxu0 0.0
      %337 = vmatprep.subr.mxu0 0.0
      %338 = vmatpush1.msra.mxu0 0.0
      %339 = vmatprep.subr.mxu0 0.0
      %340 = vmatpush1.msra.mxu0 0.0
      %341 = vmatprep.subr.mxu0 0.0
      %342 = vmatpush1.msra.mxu0 0.0
      %343 = vmatprep.subr.mxu0 0.0
      %344 = vmatpush1.msra.mxu0 0.0
      %345 = vmatprep.subr.mxu0 0.0
      %346 = vmatpush1.msra.mxu0 0.0
      %347 = vmatprep.subr.mxu0 0.0
      %348 = vmatpush1.msra.mxu0 0.0
      %349 = vmatprep.subr.mxu0 0.0
      %350 = vmatpush1.msra.mxu0 0.0
      %351 = vmatprep.subr.mxu0 0.0
      %352 = vmatpush1.msra.mxu0 0.0
      %353 = vmatprep.subr.mxu0 0.0
      %354 = vmatpush1.msra.mxu0 0.0
      %355 = vmatprep.subr.mxu0 0.0
      %356 = vmatpush1.msra.mxu0 0.0
      %357 = vmatprep.subr.mxu0 0.0
      %358 = vmatpush1.msra.mxu0 0.0
      %359 = vmatprep.subr.mxu0 0.0
      %360 = vmatpush1.msra.mxu0 0.0
      %361 = vmatprep.subr.mxu0 0.0
      %362 = vmatpush1.msra.mxu0 0.0
      %363 = vmatprep.subr.mxu0 0.0
      %364 = vmatpush1.msra.mxu0 0.0
      %365 = vmatprep.subr.mxu0 0.0
      %366 = vmatpush1.msra.mxu0 0.0
      %367 = vmatprep.subr.mxu0 0.0
      %368 = vmatpush1.msra.mxu0 0.0
      %369 = vmatprep.subr.mxu0 0.0
      %370 = vmatpush1.msra.mxu0 0.0
      %371 = vmatprep.subr.mxu0 0.0
      %372 = vmatpush1.msra.mxu0 0.0
      %373 = vmatprep.subr.mxu0 0.0
      %374 = vmatpush1.msra.mxu0 0.0
      %375 = vmatprep.subr.mxu0 0.0
      %376 = vmatpush1.msra.mxu0 0.0
      %377 = vmatprep.mubr.f32.mxu0 0.0
      %378 = vmatmul.mubr.f32.gmra.mrb[0].mxu0 %v305
      %v379 = vpop.f32.mrb[0].mxu0
      %v380 = vadd.f32 %v291, %v379
      %v381 = vpop.f32.mrb[0].mxu0
      %v382 = vadd.f32 %v291, %v381
      %383 = vmatprep.mubr.f32.mxu0 0.0
      %384 = vmatmul.mubr.f32.gmra.mrb[0].mxu0 %v308
      %v385 = vpop.f32.mrb[0].mxu0
      %v386 = vadd.f32 %v296, %v385
      %v387 = vpop.f32.mrb[0].mxu0
      %v388 = vadd.f32 %v296, %v387
      %389 = vmatprep.mubr.f32.mxu0 0.0
      %390 = vmatmul.mubr.f32.gmra.mrb[0].mxu0 %v311
      %v391 = vpop.f32.mrb[0].mxu0
      %v392 = vadd.f32 %v301, %v391
      %v393 = vpop.f32.mrb[0].mxu0
      %v394 = vadd.f32 %v301, %v393
      %395 = vdwg.mxu0
      %v396 = vrot.slane %v380, 4
      %v397 = vadd.f32 %v380, %v396
      %v398 = vrot.slane %v397, 2
      %v399 = vadd.f32 %v397, %v398
      %v400 = vrot.slane %v399, 1
      %v401 = vadd.f32 %v399, %v400
      %v402 = vrot.slane %v382, 4
      %v403 = vadd.f32 %v382, %v402
      %v404 = vrot.slane %v403, 2
      %v405 = vadd.f32 %v403, %v404
      %v406 = vrot.slane %v405, 1
      %v407 = vadd.f32 %v405, %v406
      %v408 = vrot.slane %v386, 4
      %v409 = vadd.f32 %v386, %v408
      %v410 = vrot.slane %v409, 2
      %v411 = vadd.f32 %v409, %v410
      %v412 = vrot.slane %v411, 1
      %v413 = vadd.f32 %v411, %v412
      %v414 = vrot.slane %v388, 4
      %v415 = vadd.f32 %v388, %v414
      %v416 = vrot.slane %v415, 2
      %v417 = vadd.f32 %v415, %v416
      %v418 = vrot.slane %v417, 1
      %v419 = vadd.f32 %v417, %v418
      %v420 = vadd.f32 %v401, %v413
      %v421 = vadd.f32 %v407, %v419
      %v422 = vmul.f32 %v420, 0.083333336
      %v423 = vmul.f32 %v421, 0.083333336
      %v424 = vsub.f32 %v380, %v422
      %v425 = vsub.f32 %v382, %v423
      %v426 = vsub.f32 %v386, %v422
      %v427 = vsub.f32 %v388, %v423
      %v428 = vmul.f32 %v424, %v424
      %v429 = vmul.f32 %v425, %v425
      %v430 = vrot.slane %v428, 4
      %v431 = vadd.f32 %v428, %v430
      %v432 = vrot.slane %v431, 2
      %v433 = vadd.f32 %v431, %v432
      %v434 = vrot.slane %v433, 1
      %v435 = vadd.f32 %v433, %v434
      %v436 = vrot.slane %v429, 4
      %v437 = vadd.f32 %v429, %v436
      %v438 = vrot.slane %v437, 2
      %v439 = vadd.f32 %v437, %v438
      %v440 = vrot.slane %v439, 1
      %v441 = vadd.f32 %v439, %v440
      %v442 = vmul.f32 %v426, %v426
      %v443 = vmul.f32 %v427, %v427
      %v444 = vrot.slane %v442, 4
      %v445 = vadd.f32 %v442, %v444
      %v446 = vrot.slane %v445, 2
      %v447 = vadd.f32 %v445, %v446
      %v448 = vrot.slane %v447, 1
      %v449 = vadd.f32 %v447, %v448
      %v450 = vrot.slane %v443, 4
      %v451 = vadd.f32 %v443, %v450
      %v452 = vrot.slane %v451, 2
      %v453 = vadd.f32 %v451, %v452
      %v454 = vrot.slane %v453, 1
      %v455 = vadd.f32 %v453, %v454
      %v456 = vadd.f32 %v435, %v449
      %v457 = vadd.f32 %v441, %v455
      %v458 = vmul.f32 %v422, 4.0
      %v459 = vmul.f32 %v423, 4.0
      %v460 = vmul.f32 %v458, %v422
      %v461 = vmul.f32 %v459, %v423
      %v462 = vsub.f32 %v456, %v460
      %v463 = vsub.f32 %v457, %v461
      %v464 = vmul.f32 %v462, 0.083333336
      %v465 = vmul.f32 %v463, 0.083333336
      %v466 = vadd.f32 %v464, 1e-06
      %v467 = vadd.f32 %v465, 1e-06
      %v468 = vrsqrt.pop %v466
      %v469 = vrsqrt.pop %v467
      %v470 = vmul.f32 %v424, %v468
      %v471 = vmul.f32 %v425, %v469
      %v472 = vld [vmem:[%s6 + $0x18] sm:$0xff]
      %474 = vset.pattern.permute.xlu0 0
      %475 = vperm.xlu0 %474, %v472
      %v476 = vpop.permute.xlu0 %475
      %v478 = vmul.f32 %v470, %v476
      %v479 = vmul.f32 %v471, %v476
      %v480 = vld [vmem:[%s6 + $0x20] sm:$0xff]
      %482 = vset.pattern.permute.xlu0 0
      %483 = vperm.xlu0 %482, %v480
      %v484 = vpop.permute.xlu0 %483
      %v486 = vadd.f32 %v478, %v484
      %v487 = vadd.f32 %v479, %v484
      %v488 = vmul.f32 %v426, %v468
      %v489 = vmul.f32 %v427, %v469
      %v490 = vld [vmem:[%s6 + $0x28] sm:$0xff]
      %492 = vset.pattern.permute.xlu0 0
      %493 = vperm.xlu0 %492, %v490
      %v494 = vpop.permute.xlu0 %493
      %v496 = vmul.f32 %v488, %v494
      %v497 = vmul.f32 %v489, %v494
      %v498 = vld [vmem:[%s6 + $0x30] sm:$0xff]
      %500 = vset.pattern.permute.xlu0 0
      %501 = vperm.xlu0 %500, %v498
      %v502 = vpop.permute.xlu0 %501
      %v504 = vadd.f32 %v496, %v502
      %v505 = vadd.f32 %v497, %v502
      %v506 = vld [vmem:[%s4 + $0x40] sm:$0xff]
      %v507 = vld [vmem:[%s4 + $0x48] sm:$0xff]
      %v508 = vmul.f32 %v506, %v486
      %v509 = vmul.f32 %v507, %v487
      %510 = vrot.lane.b32.xlu0 %v486, 17
      %v511 = vpop.permute.xlu0 %510
      %512 = vrot.lane.b32.xlu0 %v487, 17
      %v513 = vpop.permute.xlu0 %512
      %v514 = vlaneseq
      %v515 = vand.u32 %v514, 127
      %vm516 = vcmp.lt.s32.totalorder %v515, 17
      %v517 = vsel %vm516, %v511, %v513
      %v518 = vsel %vm516, %v513, %v511
      %v519 = vld [vmem:[%s4] sm:$0xff]
      %v520 = vld [vmem:[%s4 + $0x8] sm:$0xff]
      %v521 = vmul.f32 %v519, %v518
      %v522 = vmul.f32 %v520, %v517
      %v523 = vadd.f32 %v508, %v521
      %v524 = vadd.f32 %v509, %v522
      %525 = vrot.lane.b32.xlu0 %v486, 16
      %v526 = vpop.permute.xlu0 %525
      %527 = vrot.lane.b32.xlu0 %v487, 16
      %v528 = vpop.permute.xlu0 %527
      %vm529 = vcmp.lt.s32.totalorder %v515, 16
      %v530 = vsel %vm529, %v526, %v528
      %v531 = vsel %vm529, %v528, %v526
      %v532 = vld [vmem:[%s4 + $0x10] sm:$0xff]
      %v533 = vld [vmem:[%s4 + $0x18] sm:$0xff]
      %v534 = vmul.f32 %v532, %v531
      %v535 = vmul.f32 %v533, %v530
      %v536 = vadd.f32 %v523, %v534
      %v537 = vadd.f32 %v524, %v535
      %538 = vrot.lane.b32.xlu0 %v486, 15
      %v539 = vpop.permute.xlu0 %538
      %540 = vrot.lane.b32.xlu0 %v487, 15
      %v541 = vpop.permute.xlu0 %540
      %vm542 = vcmp.lt.s32.totalorder %v515, 15
      %v543 = vsel %vm542, %v539, %v541
      %v544 = vsel %vm542, %v541, %v539
      %v545 = vld [vmem:[%s4 + $0x20] sm:$0xff]
      %v546 = vld [vmem:[%s4 + $0x28] sm:$0xff]
      %v547 = vmul.f32 %v545, %v544
      %v548 = vmul.f32 %v546, %v543
      %v549 = vadd.f32 %v536, %v547
      %v550 = vadd.f32 %v537, %v548
      %551 = vrot.lane.b32.xlu0 %v486, 1
      %v552 = vpop.permute.xlu0 %551
      %553 = vrot.lane.b32.xlu0 %v487, 1
      %v554 = vpop.permute.xlu0 %553
      %vm555 = vcmp.lt.s32.totalorder %v515, 1
      %v556 = vsel %vm555, %v552, %v554
      %v557 = vsel %vm555, %v554, %v552
      %v558 = vld [vmem:[%s4 + $0x30] sm:$0xff]
      %v559 = vld [vmem:[%s4 + $0x38] sm:$0xff]
      %v560 = vmul.f32 %v558, %v557
      %v561 = vmul.f32 %v559, %v556
      %v562 = vadd.f32 %v549, %v560
      %v563 = vadd.f32 %v550, %v561
      %564 = vrot.lane.b32.xlu0 %v486, 127
      %v565 = vpop.permute.xlu0 %564
      %566 = vrot.lane.b32.xlu0 %v487, 127
      %v567 = vpop.permute.xlu0 %566
      %vm568 = vcmp.lt.s32.totalorder %v515, 127
      %v569 = vsel %vm568, %v565, %v567
      %v570 = vsel %vm568, %v567, %v565
      %v571 = vld [vmem:[%s4 + $0x50] sm:$0xff]
      %v572 = vld [vmem:[%s4 + $0x58] sm:$0xff]
      %v573 = vmul.f32 %v571, %v569
      %v574 = vmul.f32 %v572, %v570
      %v575 = vadd.f32 %v562, %v573
      %v576 = vadd.f32 %v563, %v574
      %577 = vrot.lane.b32.xlu0 %v486, 113
      %v578 = vpop.permute.xlu0 %577
      %579 = vrot.lane.b32.xlu0 %v487, 113
      %v580 = vpop.permute.xlu0 %579
      %vm581 = vcmp.lt.s32.totalorder %v515, 113
      %v582 = vsel %vm581, %v578, %v580
      %v583 = vsel %vm581, %v580, %v578
      %v584 = vld [vmem:[%s4 + $0x60] sm:$0xff]
      %v585 = vld [vmem:[%s4 + $0x68] sm:$0xff]
      %v586 = vmul.f32 %v584, %v582
      %v587 = vmul.f32 %v585, %v583
      %v588 = vadd.f32 %v575, %v586
      %v589 = vadd.f32 %v576, %v587
      %590 = vrot.lane.b32.xlu0 %v486, 112
      %v591 = vpop.permute.xlu0 %590
      %592 = vrot.lane.b32.xlu0 %v487, 112
      %v593 = vpop.permute.xlu0 %592
      %vm594 = vcmp.lt.s32.totalorder %v515, 112
      %v595 = vsel %vm594, %v591, %v593
      %v596 = vsel %vm594, %v593, %v591
      %v597 = vld [vmem:[%s4 + $0x70] sm:$0xff]
      %v598 = vld [vmem:[%s4 + $0x78] sm:$0xff]
      %v599 = vmul.f32 %v597, %v595
      %v600 = vmul.f32 %v598, %v596
      %v601 = vadd.f32 %v588, %v599
      %v602 = vadd.f32 %v589, %v600
      %603 = vrot.lane.b32.xlu0 %v486, 111
      %v604 = vpop.permute.xlu0 %603
      %605 = vrot.lane.b32.xlu0 %v487, 111
      %v606 = vpop.permute.xlu0 %605
      %vm607 = vcmp.lt.s32.totalorder %v515, 111
      %v608 = vsel %vm607, %v604, %v606
      %v609 = vsel %vm607, %v606, %v604
      %v610 = vld [vmem:[%s4 + $0x80] sm:$0xff]
      %v611 = vld [vmem:[%s4 + $0x88] sm:$0xff]
      %v612 = vmul.f32 %v610, %v608
      %v613 = vmul.f32 %v611, %v609
      %v614 = vadd.f32 %v601, %v612
      %v615 = vadd.f32 %v602, %v613
      %v616 = vpack.c.bf16 %v504, %v504
      %v617 = vpack.c.bf16 %v505, %v505
      %v618 = vld [vmem:[%s1] sm:$0xff]
      %v619 = vld [vmem:[%s1 + $0x8] sm:$0xff]
      %v620 = vld [vmem:[%s1 + $0x10] sm:$0xff]
      %v621 = vld [vmem:[%s1 + $0x18] sm:$0xff]
      %v622 = vld [vmem:[%s1 + $0x20] sm:$0xff]
      %v623 = vld [vmem:[%s1 + $0x28] sm:$0xff]
      %v624 = vld [vmem:[%s1 + $0x30] sm:$0xff]
      %v625 = vld [vmem:[%s1 + $0x38] sm:$0xff]
      %v626 = vld [vmem:[%s1 + $0x40] sm:$0xff]
      %v627 = vld [vmem:[%s1 + $0x48] sm:$0xff]
      %v628 = vld [vmem:[%s1 + $0x50] sm:$0xff]
      %v629 = vld [vmem:[%s1 + $0x58] sm:$0xff]
      %v630 = vld [vmem:[%s1 + $0x60] sm:$0xff]
      %v631 = vld [vmem:[%s1 + $0x68] sm:$0xff]
      %v632 = vld [vmem:[%s1 + $0x70] sm:$0xff]
      %v633 = vld [vmem:[%s1 + $0x78] sm:$0xff]
      %v634 = vld [vmem:[%s1 + $0x80] sm:$0xff]
      %v635 = vld [vmem:[%s1 + $0x88] sm:$0xff]
      %v636 = vld [vmem:[%s1 + $0x90] sm:$0xff]
      %v637 = vld [vmem:[%s1 + $0x98] sm:$0xff]
      %v638 = vld [vmem:[%s1 + $0xa0] sm:$0xff]
      %v639 = vld [vmem:[%s1 + $0xa8] sm:$0xff]
      %v640 = vld [vmem:[%s1 + $0xb0] sm:$0xff]
      %v641 = vld [vmem:[%s1 + $0xb8] sm:$0xff]
      %v642 = vld [vmem:[%s1 + $0xc0] sm:$0xff]
      %v643 = vld [vmem:[%s1 + $0xc8] sm:$0xff]
      %v644 = vld [vmem:[%s1 + $0xd0] sm:$0xff]
      %v645 = vld [vmem:[%s1 + $0xd8] sm:$0xff]
      %v646 = vld [vmem:[%s1 + $0xe0] sm:$0xff]
      %v647 = vld [vmem:[%s1 + $0xe8] sm:$0xff]
      %v648 = vld [vmem:[%s1 + $0xf0] sm:$0xff]
      %v649 = vld [vmem:[%s1 + $0xf8] sm:$0xff]
      %v682 = vunpack.c.l.b16 %v618
      %v683 = vunpack.c.h.b16 %v618
      %v684 = vunpack.c.l.b16 %v619
      %v685 = vunpack.c.h.b16 %v619
      %v686 = vunpack.c.l.b16 %v620
      %v687 = vunpack.c.h.b16 %v620
      %v688 = vunpack.c.l.b16 %v621
      %v689 = vunpack.c.h.b16 %v621
      %v690 = vunpack.c.l.b16 %v622
      %v691 = vunpack.c.h.b16 %v622
      %v692 = vunpack.c.l.b16 %v623
      %v693 = vunpack.c.h.b16 %v623
      %v694 = vunpack.c.l.b16 %v624
      %v695 = vunpack.c.h.b16 %v624
      %v696 = vunpack.c.l.b16 %v625
      %v697 = vunpack.c.h.b16 %v625
      %v698 = vunpack.c.l.b16 %v626
      %v699 = vunpack.c.h.b16 %v626
      %v700 = vunpack.c.l.b16 %v627
      %v701 = vunpack.c.h.b16 %v627
      %v702 = vunpack.c.l.b16 %v628
      %v703 = vunpack.c.h.b16 %v628
      %v704 = vunpack.c.l.b16 %v629
      %v705 = vunpack.c.h.b16 %v629
      %v706 = vunpack.c.l.b16 %v630
      %v707 = vunpack.c.h.b16 %v630
      %v708 = vunpack.c.l.b16 %v631
      %v709 = vunpack.c.h.b16 %v631
      %v710 = vunpack.c.l.b16 %v632
      %v711 = vunpack.c.h.b16 %v632
      %v712 = vunpack.c.l.b16 %v633
      %v713 = vunpack.c.h.b16 %v633
      %v714 = vunpack.c.l.b16 %v634
      %v715 = vunpack.c.h.b16 %v634
      %v716 = vunpack.c.l.b16 %v635
      %v717 = vunpack.c.h.b16 %v635
      %v718 = vunpack.c.l.b16 %v636
      %v719 = vunpack.c.h.b16 %v636
      %v720 = vunpack.c.l.b16 %v637
      %v721 = vunpack.c.h.b16 %v637
      %v722 = vunpack.c.l.b16 %v638
      %v723 = vunpack.c.h.b16 %v638
      %v724 = vunpack.c.l.b16 %v639
      %v725 = vunpack.c.h.b16 %v639
      %v726 = vunpack.c.l.b16 %v640
      %v727 = vunpack.c.h.b16 %v640
      %v728 = vunpack.c.l.b16 %v641
      %v729 = vunpack.c.h.b16 %v641
      %v730 = vunpack.c.l.b16 %v642
      %v731 = vunpack.c.h.b16 %v642
      %v732 = vunpack.c.l.b16 %v643
      %v733 = vunpack.c.h.b16 %v643
      %v734 = vunpack.c.l.b16 %v644
      %v735 = vunpack.c.h.b16 %v644
      %v736 = vunpack.c.l.b16 %v645
      %v737 = vunpack.c.h.b16 %v645
      %v738 = vunpack.c.l.b16 %v646
      %v739 = vunpack.c.h.b16 %v646
      %v740 = vunpack.c.l.b16 %v647
      %v741 = vunpack.c.h.b16 %v647
      %v742 = vunpack.c.l.b16 %v648
      %v743 = vunpack.c.h.b16 %v648
      %v744 = vunpack.c.l.b16 %v649
      %v745 = vunpack.c.h.b16 %v649
      %v746 = vpack.c.b16 %v684, %v682
      %v747 = vpack.c.b16 %v685, %v683
      %v748 = vpack.c.b16 %v688, %v686
      %v749 = vpack.c.b16 %v689, %v687
      %v750 = vpack.c.b16 %v692, %v690
      %v751 = vpack.c.b16 %v693, %v691
      %v752 = vpack.c.b16 %v696, %v694
      %v753 = vpack.c.b16 %v697, %v695
      %v754 = vpack.c.b16 %v700, %v698
      %v755 = vpack.c.b16 %v701, %v699
      %v756 = vpack.c.b16 %v704, %v702
      %v757 = vpack.c.b16 %v705, %v703
      %v758 = vpack.c.b16 %v708, %v706
      %v759 = vpack.c.b16 %v709, %v707
      %v760 = vpack.c.b16 %v712, %v710
      %v761 = vpack.c.b16 %v713, %v711
      %v762 = vpack.c.b16 %v716, %v714
      %v763 = vpack.c.b16 %v717, %v715
      %v764 = vpack.c.b16 %v720, %v718
      %v765 = vpack.c.b16 %v721, %v719
      %v766 = vpack.c.b16 %v724, %v722
      %v767 = vpack.c.b16 %v725, %v723
      %v768 = vpack.c.b16 %v728, %v726
      %v769 = vpack.c.b16 %v729, %v727
      %v770 = vpack.c.b16 %v732, %v730
      %v771 = vpack.c.b16 %v733, %v731
      %v772 = vpack.c.b16 %v736, %v734
      %v773 = vpack.c.b16 %v737, %v735
      %v774 = vpack.c.b16 %v740, %v738
      %v775 = vpack.c.b16 %v741, %v739
      %v776 = vpack.c.b16 %v744, %v742
      %v777 = vpack.c.b16 %v745, %v743
      %810 = vmatprep.subr.bf16.mxu0 %v747
      %811 = vmatpush1.bf16.msra.mxu0 %v746
      %812 = vmatprep.subr.bf16.mxu0 %v749
      %813 = vmatpush1.bf16.msra.mxu0 %v748
      %814 = vmatprep.subr.bf16.mxu0 %v751
      %815 = vmatpush1.bf16.msra.mxu0 %v750
      %816 = vmatprep.subr.bf16.mxu0 %v753
      %817 = vmatpush1.bf16.msra.mxu0 %v752
      %818 = vmatprep.subr.bf16.mxu0 %v755
      %819 = vmatpush1.bf16.msra.mxu0 %v754
      %820 = vmatprep.subr.bf16.mxu0 %v757
      %821 = vmatpush1.bf16.msra.mxu0 %v756
      %822 = vmatprep.subr.bf16.mxu0 %v759
      %823 = vmatpush1.bf16.msra.mxu0 %v758
      %824 = vmatprep.subr.bf16.mxu0 %v761
      %825 = vmatpush1.bf16.msra.mxu0 %v760
      %826 = vmatprep.subr.bf16.mxu0 %v763
      %827 = vmatpush1.bf16.msra.mxu0 %v762
      %828 = vmatprep.subr.bf16.mxu0 %v765
      %829 = vmatpush1.bf16.msra.mxu0 %v764
      %830 = vmatprep.subr.bf16.mxu0 %v767
      %831 = vmatpush1.bf16.msra.mxu0 %v766
      %832 = vmatprep.subr.bf16.mxu0 %v769
      %833 = vmatpush1.bf16.msra.mxu0 %v768
      %834 = vmatprep.subr.bf16.mxu0 %v771
      %835 = vmatpush1.bf16.msra.mxu0 %v770
      %836 = vmatprep.subr.bf16.mxu0 %v773
      %837 = vmatpush1.bf16.msra.mxu0 %v772
      %838 = vmatprep.subr.bf16.mxu0 %v775
      %839 = vmatpush1.bf16.msra.mxu0 %v774
      %840 = vmatprep.subr.bf16.mxu0 %v777
      %841 = vmatpush1.bf16.msra.mxu0 %v776
      %842 = vmatprep.mubr.bf16.mxu0 %v617
      %843 = vmatmul.mubr.bf16.gmra.mrb[0].mxu0 %v616
      %v844 = vpop.f32.mrb[0].mxu0
      %v845 = vadd.f32 0.0, %v844
      %v846 = vpop.f32.mrb[0].mxu0
      %v847 = vadd.f32 0.0, %v846
      %v848 = vpop.f32.mrb[0].mxu0
      %v849 = vpop.f32.mrb[0].mxu0
      %850 = vdwg.mxu0
      %v851 = vld [vmem:[%s1 + $0x100] sm:$0xff]
      %v852 = vld [vmem:[%s1 + $0x108] sm:$0xff]
      %v853 = vld [vmem:[%s1 + $0x110] sm:$0xff]
      %v854 = vld [vmem:[%s1 + $0x118] sm:$0xff]
      %v855 = vld [vmem:[%s1 + $0x120] sm:$0xff]
      %v856 = vld [vmem:[%s1 + $0x128] sm:$0xff]
      %v857 = vld [vmem:[%s1 + $0x130] sm:$0xff]
      %v858 = vld [vmem:[%s1 + $0x138] sm:$0xff]
      %v859 = vld [vmem:[%s1 + $0x140] sm:$0xff]
      %v860 = vld [vmem:[%s1 + $0x148] sm:$0xff]
      %v861 = vld [vmem:[%s1 + $0x150] sm:$0xff]
      %v862 = vld [vmem:[%s1 + $0x158] sm:$0xff]
      %v863 = vld [vmem:[%s1 + $0x160] sm:$0xff]
      %v864 = vld [vmem:[%s1 + $0x168] sm:$0xff]
      %v865 = vld [vmem:[%s1 + $0x170] sm:$0xff]
      %v866 = vld [vmem:[%s1 + $0x178] sm:$0xff]
      %v867 = vld [vmem:[%s1 + $0x180] sm:$0xff]
      %v868 = vld [vmem:[%s1 + $0x188] sm:$0xff]
      %v869 = vld [vmem:[%s1 + $0x190] sm:$0xff]
      %v870 = vld [vmem:[%s1 + $0x198] sm:$0xff]
      %v871 = vld [vmem:[%s1 + $0x1a0] sm:$0xff]
      %v872 = vld [vmem:[%s1 + $0x1a8] sm:$0xff]
      %v873 = vld [vmem:[%s1 + $0x1b0] sm:$0xff]
      %v874 = vld [vmem:[%s1 + $0x1b8] sm:$0xff]
      %v875 = vld [vmem:[%s1 + $0x1c0] sm:$0xff]
      %v876 = vld [vmem:[%s1 + $0x1c8] sm:$0xff]
      %v877 = vld [vmem:[%s1 + $0x1d0] sm:$0xff]
      %v878 = vld [vmem:[%s1 + $0x1d8] sm:$0xff]
      %v879 = vld [vmem:[%s1 + $0x1e0] sm:$0xff]
      %v880 = vld [vmem:[%s1 + $0x1e8] sm:$0xff]
      %v881 = vld [vmem:[%s1 + $0x1f0] sm:$0xff]
      %v882 = vld [vmem:[%s1 + $0x1f8] sm:$0xff]
      %v915 = vunpack.c.l.b16 %v851
      %v916 = vunpack.c.h.b16 %v851
      %v917 = vunpack.c.l.b16 %v852
      %v918 = vunpack.c.h.b16 %v852
      %v919 = vunpack.c.l.b16 %v853
      %v920 = vunpack.c.h.b16 %v853
      %v921 = vunpack.c.l.b16 %v854
      %v922 = vunpack.c.h.b16 %v854
      %v923 = vunpack.c.l.b16 %v855
      %v924 = vunpack.c.h.b16 %v855
      %v925 = vunpack.c.l.b16 %v856
      %v926 = vunpack.c.h.b16 %v856
      %v927 = vunpack.c.l.b16 %v857
      %v928 = vunpack.c.h.b16 %v857
      %v929 = vunpack.c.l.b16 %v858
      %v930 = vunpack.c.h.b16 %v858
      %v931 = vunpack.c.l.b16 %v859
      %v932 = vunpack.c.h.b16 %v859
      %v933 = vunpack.c.l.b16 %v860
      %v934 = vunpack.c.h.b16 %v860
      %v935 = vunpack.c.l.b16 %v861
      %v936 = vunpack.c.h.b16 %v861
      %v937 = vunpack.c.l.b16 %v862
      %v938 = vunpack.c.h.b16 %v862
      %v939 = vunpack.c.l.b16 %v863
      %v940 = vunpack.c.h.b16 %v863
      %v941 = vunpack.c.l.b16 %v864
      %v942 = vunpack.c.h.b16 %v864
      %v943 = vunpack.c.l.b16 %v865
      %v944 = vunpack.c.h.b16 %v865
      %v945 = vunpack.c.l.b16 %v866
      %v946 = vunpack.c.h.b16 %v866
      %v947 = vunpack.c.l.b16 %v867
      %v948 = vunpack.c.h.b16 %v867
      %v949 = vunpack.c.l.b16 %v868
      %v950 = vunpack.c.h.b16 %v868
      %v951 = vunpack.c.l.b16 %v869
      %v952 = vunpack.c.h.b16 %v869
      %v953 = vunpack.c.l.b16 %v870
      %v954 = vunpack.c.h.b16 %v870
      %v955 = vunpack.c.l.b16 %v871
      %v956 = vunpack.c.h.b16 %v871
      %v957 = vunpack.c.l.b16 %v872
      %v958 = vunpack.c.h.b16 %v872
      %v959 = vunpack.c.l.b16 %v873
      %v960 = vunpack.c.h.b16 %v873
      %v961 = vunpack.c.l.b16 %v874
      %v962 = vunpack.c.h.b16 %v874
      %v963 = vunpack.c.l.b16 %v875
      %v964 = vunpack.c.h.b16 %v875
      %v965 = vunpack.c.l.b16 %v876
      %v966 = vunpack.c.h.b16 %v876
      %v967 = vunpack.c.l.b16 %v877
      %v968 = vunpack.c.h.b16 %v877
      %v969 = vunpack.c.l.b16 %v878
      %v970 = vunpack.c.h.b16 %v878
      %v971 = vunpack.c.l.b16 %v879
      %v972 = vunpack.c.h.b16 %v879
      %v973 = vunpack.c.l.b16 %v880
      %v974 = vunpack.c.h.b16 %v880
      %v975 = vunpack.c.l.b16 %v881
      %v976 = vunpack.c.h.b16 %v881
      %v977 = vunpack.c.l.b16 %v882
      %v978 = vunpack.c.h.b16 %v882
      %v979 = vpack.c.b16 %v917, %v915
      %v980 = vpack.c.b16 %v918, %v916
      %v981 = vpack.c.b16 %v921, %v919
      %v982 = vpack.c.b16 %v922, %v920
      %v983 = vpack.c.b16 %v925, %v923
      %v984 = vpack.c.b16 %v926, %v924
      %v985 = vpack.c.b16 %v929, %v927
      %v986 = vpack.c.b16 %v930, %v928
      %v987 = vpack.c.b16 %v933, %v931
      %v988 = vpack.c.b16 %v934, %v932
      %v989 = vpack.c.b16 %v937, %v935
      %v990 = vpack.c.b16 %v938, %v936
      %v991 = vpack.c.b16 %v941, %v939
      %v992 = vpack.c.b16 %v942, %v940
      %v993 = vpack.c.b16 %v945, %v943
      %v994 = vpack.c.b16 %v946, %v944
      %v995 = vpack.c.b16 %v949, %v947
      %v996 = vpack.c.b16 %v950, %v948
      %v997 = vpack.c.b16 %v953, %v951
      %v998 = vpack.c.b16 %v954, %v952
      %v999 = vpack.c.b16 %v957, %v955
      %v1000 = vpack.c.b16 %v958, %v956
      %v1001 = vpack.c.b16 %v961, %v959
      %v1002 = vpack.c.b16 %v962, %v960
      %v1003 = vpack.c.b16 %v965, %v963
      %v1004 = vpack.c.b16 %v966, %v964
      %v1005 = vpack.c.b16 %v969, %v967
      %v1006 = vpack.c.b16 %v970, %v968
      %v1007 = vpack.c.b16 %v973, %v971
      %v1008 = vpack.c.b16 %v974, %v972
      %v1009 = vpack.c.b16 %v977, %v975
      %v1010 = vpack.c.b16 %v978, %v976
      %1043 = vmatprep.subr.bf16.mxu0 %v980
      %1044 = vmatpush1.bf16.msra.mxu0 %v979
      %1045 = vmatprep.subr.bf16.mxu0 %v982
      %1046 = vmatpush1.bf16.msra.mxu0 %v981
      %1047 = vmatprep.subr.bf16.mxu0 %v984
      %1048 = vmatpush1.bf16.msra.mxu0 %v983
      %1049 = vmatprep.subr.bf16.mxu0 %v986
      %1050 = vmatpush1.bf16.msra.mxu0 %v985
      %1051 = vmatprep.subr.bf16.mxu0 %v988
      %1052 = vmatpush1.bf16.msra.mxu0 %v987
      %1053 = vmatprep.subr.bf16.mxu0 %v990
      %1054 = vmatpush1.bf16.msra.mxu0 %v989
      %1055 = vmatprep.subr.bf16.mxu0 %v992
      %1056 = vmatpush1.bf16.msra.mxu0 %v991
      %1057 = vmatprep.subr.bf16.mxu0 %v994
      %1058 = vmatpush1.bf16.msra.mxu0 %v993
      %1059 = vmatprep.subr.bf16.mxu0 %v996
      %1060 = vmatpush1.bf16.msra.mxu0 %v995
      %1061 = vmatprep.subr.bf16.mxu0 %v998
      %1062 = vmatpush1.bf16.msra.mxu0 %v997
      %1063 = vmatprep.subr.bf16.mxu0 %v1000
      %1064 = vmatpush1.bf16.msra.mxu0 %v999
      %1065 = vmatprep.subr.bf16.mxu0 %v1002
      %1066 = vmatpush1.bf16.msra.mxu0 %v1001
      %1067 = vmatprep.subr.bf16.mxu0 %v1004
      %1068 = vmatpush1.bf16.msra.mxu0 %v1003
      %1069 = vmatprep.subr.bf16.mxu0 %v1006
      %1070 = vmatpush1.bf16.msra.mxu0 %v1005
      %1071 = vmatprep.subr.bf16.mxu0 %v1008
      %1072 = vmatpush1.bf16.msra.mxu0 %v1007
      %1073 = vmatprep.subr.bf16.mxu0 %v1010
      %1074 = vmatpush1.bf16.msra.mxu0 %v1009
      %1075 = vmatprep.mubr.bf16.mxu0 %v617
      %1076 = vmatmul.mubr.bf16.gmra.mrb[0].mxu0 %v616
      %v1077 = vpop.f32.mrb[0].mxu0
      %v1078 = vadd.f32 0.0, %v1077
      %v1079 = vpop.f32.mrb[0].mxu0
      %v1080 = vadd.f32 0.0, %v1079
      %v1081 = vpop.f32.mrb[0].mxu0
      %v1082 = vpop.f32.mrb[0].mxu0
      %1083 = vdwg.mxu0
      %v1084 = vld [vmem:[%s3] sm:$0xff]
      %v1085 = vld [vmem:[%s3 + $0x8] sm:$0xff]
      %v1086 = vld [vmem:[%s3 + $0x10] sm:$0xff]
      %v1087 = vld [vmem:[%s3 + $0x18] sm:$0xff]
      %v1088 = vmul.f32 %v845, %v1084
      %v1089 = vmul.f32 %v847, %v1085
      %v1090 = vmul.f32 %v1078, %v1086
      %v1091 = vmul.f32 %v1080, %v1087
      %v1092 = vsub.f32 %v1088, %v1090
      %v1093 = vsub.f32 %v1089, %v1091
      %v1094 = vpack.c.bf16 %v1092, %v1092
      %v1095 = vpack.c.bf16 %v1093, %v1093
      %v1096 = vmul.f32 %v845, %v1086
      %v1097 = vmul.f32 %v847, %v1087
      %v1098 = vmul.f32 %v1078, %v1084
      %v1099 = vmul.f32 %v1080, %v1085
      %v1100 = vadd.f32 %v1096, %v1098
      %v1101 = vadd.f32 %v1097, %v1099
      %v1102 = vpack.c.bf16 %v1100, %v1100
      %v1103 = vpack.c.bf16 %v1101, %v1101
      %v1104 = vld [vmem:[%s2] sm:$0xff]
      %v1105 = vld [vmem:[%s2 + $0x8] sm:$0xff]
      %v1106 = vld [vmem:[%s2 + $0x10] sm:$0xff]
      %v1107 = vld [vmem:[%s2 + $0x18] sm:$0xff]
      %v1108 = vld [vmem:[%s2 + $0x20] sm:$0xff]
      %v1109 = vld [vmem:[%s2 + $0x28] sm:$0xff]
      %v1110 = vld [vmem:[%s2 + $0x30] sm:$0xff]
      %v1111 = vld [vmem:[%s2 + $0x38] sm:$0xff]
      %v1112 = vld [vmem:[%s2 + $0x40] sm:$0xff]
      %v1113 = vld [vmem:[%s2 + $0x48] sm:$0xff]
      %v1114 = vld [vmem:[%s2 + $0x50] sm:$0xff]
      %v1115 = vld [vmem:[%s2 + $0x58] sm:$0xff]
      %v1116 = vld [vmem:[%s2 + $0x60] sm:$0xff]
      %v1117 = vld [vmem:[%s2 + $0x68] sm:$0xff]
      %v1118 = vld [vmem:[%s2 + $0x70] sm:$0xff]
      %v1119 = vld [vmem:[%s2 + $0x78] sm:$0xff]
      %v1120 = vld [vmem:[%s2 + $0x80] sm:$0xff]
      %v1121 = vld [vmem:[%s2 + $0x88] sm:$0xff]
      %v1140 = vunpack.c.l.b16 %v1104
      %v1141 = vunpack.c.h.b16 %v1104
      %v1142 = vunpack.c.l.b16 %v1105
      %v1143 = vunpack.c.h.b16 %v1105
      %v1144 = vunpack.c.l.b16 %v1106
      %v1145 = vunpack.c.h.b16 %v1106
      %v1146 = vunpack.c.l.b16 %v1107
      %v1147 = vunpack.c.h.b16 %v1107
      %v1148 = vunpack.c.l.b16 %v1108
      %v1149 = vunpack.c.h.b16 %v1108
      %v1150 = vunpack.c.l.b16 %v1109
      %v1151 = vunpack.c.h.b16 %v1109
      %v1152 = vunpack.c.l.b16 %v1110
      %v1153 = vunpack.c.h.b16 %v1110
      %v1154 = vunpack.c.l.b16 %v1111
      %v1155 = vunpack.c.h.b16 %v1111
      %v1156 = vunpack.c.l.b16 %v1112
      %v1157 = vunpack.c.h.b16 %v1112
      %v1158 = vunpack.c.l.b16 %v1113
      %v1159 = vunpack.c.h.b16 %v1113
      %v1160 = vunpack.c.l.b16 %v1114
      %v1161 = vunpack.c.h.b16 %v1114
      %v1162 = vunpack.c.l.b16 %v1115
      %v1163 = vunpack.c.h.b16 %v1115
      %v1164 = vunpack.c.l.b16 %v1116
      %v1165 = vunpack.c.h.b16 %v1116
      %v1166 = vunpack.c.l.b16 %v1117
      %v1167 = vunpack.c.h.b16 %v1117
      %v1168 = vunpack.c.l.b16 %v1118
      %v1169 = vunpack.c.h.b16 %v1118
      %v1170 = vunpack.c.l.b16 %v1119
      %v1171 = vunpack.c.h.b16 %v1119
      %v1172 = vunpack.c.l.b16 %v1120
      %v1173 = vunpack.c.h.b16 %v1120
      %v1174 = vunpack.c.l.b16 %v1121
      %v1175 = vunpack.c.h.b16 %v1121
      %v1176 = vpack.c.b16 %v1142, %v1140
      %v1177 = vpack.c.b16 %v1143, %v1141
      %v1178 = vpack.c.b16 %v1146, %v1144
      %v1179 = vpack.c.b16 %v1147, %v1145
      %v1180 = vpack.c.b16 %v1150, %v1148
      %v1181 = vpack.c.b16 %v1151, %v1149
      %v1182 = vpack.c.b16 %v1154, %v1152
      %v1183 = vpack.c.b16 %v1155, %v1153
      %v1184 = vpack.c.b16 %v1158, %v1156
      %v1185 = vpack.c.b16 %v1159, %v1157
      %v1186 = vpack.c.b16 %v1162, %v1160
      %v1187 = vpack.c.b16 %v1163, %v1161
      %v1188 = vpack.c.b16 %v1166, %v1164
      %v1189 = vpack.c.b16 %v1167, %v1165
      %v1190 = vpack.c.b16 %v1170, %v1168
      %v1191 = vpack.c.b16 %v1171, %v1169
      %v1192 = vpack.c.b16 %v1174, %v1172
      %v1193 = vpack.c.b16 %v1175, %v1173
      %vm1212 = vcmask 130048
      %v1214 = vsel %vm1212, %v1095, 0
      %1216 = vmatprep.subr.bf16.mxu0 %v1177
      %1217 = vmatpush1.bf16.msra.mxu0 %v1176
      %1218 = vmatprep.subr.bf16.mxu0 %v1179
      %1219 = vmatpush1.bf16.msra.mxu0 %v1178
      %1220 = vmatprep.subr.bf16.mxu0 %v1181
      %1221 = vmatpush1.bf16.msra.mxu0 %v1180
      %1222 = vmatprep.subr.bf16.mxu0 %v1183
      %1223 = vmatpush1.bf16.msra.mxu0 %v1182
      %1224 = vmatprep.subr.bf16.mxu0 %v1185
      %1225 = vmatpush1.bf16.msra.mxu0 %v1184
      %1226 = vmatprep.subr.bf16.mxu0 %v1187
      %1227 = vmatpush1.bf16.msra.mxu0 %v1186
      %1228 = vmatprep.subr.bf16.mxu0 %v1189
      %1229 = vmatpush1.bf16.msra.mxu0 %v1188
      %1230 = vmatprep.subr.bf16.mxu0 %v1191
      %1231 = vmatpush1.bf16.msra.mxu0 %v1190
      %1232 = vmatprep.subr.bf16.mxu0 %v1193
      %1233 = vmatpush1.bf16.msra.mxu0 %v1192
      %1234 = vmatprep.subr.bf16.mxu0 0
      %1235 = vmatpush1.bf16.msra.mxu0 0
      %1236 = vmatprep.subr.bf16.mxu0 0
      %1237 = vmatpush1.bf16.msra.mxu0 0
      %1238 = vmatprep.subr.bf16.mxu0 0
      %1239 = vmatpush1.bf16.msra.mxu0 0
      %1240 = vmatprep.subr.bf16.mxu0 0
      %1241 = vmatpush1.bf16.msra.mxu0 0
      %1242 = vmatprep.subr.bf16.mxu0 0
      %1243 = vmatpush1.bf16.msra.mxu0 0
      %1244 = vmatprep.subr.bf16.mxu0 0
      %1245 = vmatpush1.bf16.msra.mxu0 0
      %1246 = vmatprep.subr.bf16.mxu0 0
      %1247 = vmatpush1.bf16.msra.mxu0 0
      %1248 = vmatprep.mubr.bf16.mxu0 %v1214
      %1249 = vmatmul.mubr.bf16.gmra.mrb[0].mxu0 %v1094
      %v1250 = vpop.f32.mrb[0].mxu0
      %v1251 = vadd.f32 0.0, %v1250
      %v1252 = vpop.f32.mrb[0].mxu0
      %v1253 = vadd.f32 0.0, %v1252
      %v1254 = vpop.f32.mrb[0].mxu0
      %v1255 = vpop.f32.mrb[0].mxu0
      %1256 = vdwg.mxu0
      %v1257 = vld [vmem:[%s2 + $0x90] sm:$0xff]
      %v1258 = vld [vmem:[%s2 + $0x98] sm:$0xff]
      %v1259 = vld [vmem:[%s2 + $0xa0] sm:$0xff]
      %v1260 = vld [vmem:[%s2 + $0xa8] sm:$0xff]
      %v1261 = vld [vmem:[%s2 + $0xb0] sm:$0xff]
      %v1262 = vld [vmem:[%s2 + $0xb8] sm:$0xff]
      %v1263 = vld [vmem:[%s2 + $0xc0] sm:$0xff]
      %v1264 = vld [vmem:[%s2 + $0xc8] sm:$0xff]
      %v1265 = vld [vmem:[%s2 + $0xd0] sm:$0xff]
      %v1266 = vld [vmem:[%s2 + $0xd8] sm:$0xff]
      %v1267 = vld [vmem:[%s2 + $0xe0] sm:$0xff]
      %v1268 = vld [vmem:[%s2 + $0xe8] sm:$0xff]
      %v1269 = vld [vmem:[%s2 + $0xf0] sm:$0xff]
      %v1270 = vld [vmem:[%s2 + $0xf8] sm:$0xff]
      %v1271 = vld [vmem:[%s2 + $0x100] sm:$0xff]
      %v1272 = vld [vmem:[%s2 + $0x108] sm:$0xff]
      %v1273 = vld [vmem:[%s2 + $0x110] sm:$0xff]
      %v1274 = vld [vmem:[%s2 + $0x118] sm:$0xff]
      %v1293 = vunpack.c.l.b16 %v1257
      %v1294 = vunpack.c.h.b16 %v1257
      %v1295 = vunpack.c.l.b16 %v1258
      %v1296 = vunpack.c.h.b16 %v1258
      %v1297 = vunpack.c.l.b16 %v1259
      %v1298 = vunpack.c.h.b16 %v1259
      %v1299 = vunpack.c.l.b16 %v1260
      %v1300 = vunpack.c.h.b16 %v1260
      %v1301 = vunpack.c.l.b16 %v1261
      %v1302 = vunpack.c.h.b16 %v1261
      %v1303 = vunpack.c.l.b16 %v1262
      %v1304 = vunpack.c.h.b16 %v1262
      %v1305 = vunpack.c.l.b16 %v1263
      %v1306 = vunpack.c.h.b16 %v1263
      %v1307 = vunpack.c.l.b16 %v1264
      %v1308 = vunpack.c.h.b16 %v1264
      %v1309 = vunpack.c.l.b16 %v1265
      %v1310 = vunpack.c.h.b16 %v1265
      %v1311 = vunpack.c.l.b16 %v1266
      %v1312 = vunpack.c.h.b16 %v1266
      %v1313 = vunpack.c.l.b16 %v1267
      %v1314 = vunpack.c.h.b16 %v1267
      %v1315 = vunpack.c.l.b16 %v1268
      %v1316 = vunpack.c.h.b16 %v1268
      %v1317 = vunpack.c.l.b16 %v1269
      %v1318 = vunpack.c.h.b16 %v1269
      %v1319 = vunpack.c.l.b16 %v1270
      %v1320 = vunpack.c.h.b16 %v1270
      %v1321 = vunpack.c.l.b16 %v1271
      %v1322 = vunpack.c.h.b16 %v1271
      %v1323 = vunpack.c.l.b16 %v1272
      %v1324 = vunpack.c.h.b16 %v1272
      %v1325 = vunpack.c.l.b16 %v1273
      %v1326 = vunpack.c.h.b16 %v1273
      %v1327 = vunpack.c.l.b16 %v1274
      %v1328 = vunpack.c.h.b16 %v1274
      %v1329 = vpack.c.b16 %v1295, %v1293
      %v1330 = vpack.c.b16 %v1296, %v1294
      %v1331 = vpack.c.b16 %v1299, %v1297
      %v1332 = vpack.c.b16 %v1300, %v1298
      %v1333 = vpack.c.b16 %v1303, %v1301
      %v1334 = vpack.c.b16 %v1304, %v1302
      %v1335 = vpack.c.b16 %v1307, %v1305
      %v1336 = vpack.c.b16 %v1308, %v1306
      %v1337 = vpack.c.b16 %v1311, %v1309
      %v1338 = vpack.c.b16 %v1312, %v1310
      %v1339 = vpack.c.b16 %v1315, %v1313
      %v1340 = vpack.c.b16 %v1316, %v1314
      %v1341 = vpack.c.b16 %v1319, %v1317
      %v1342 = vpack.c.b16 %v1320, %v1318
      %v1343 = vpack.c.b16 %v1323, %v1321
      %v1344 = vpack.c.b16 %v1324, %v1322
      %v1345 = vpack.c.b16 %v1327, %v1325
      %v1346 = vpack.c.b16 %v1328, %v1326
      %v1366 = vsel %vm1212, %v1103, 0
      %1368 = vmatprep.subr.bf16.mxu0 %v1330
      %1369 = vmatpush1.bf16.msra.mxu0 %v1329
      %1370 = vmatprep.subr.bf16.mxu0 %v1332
      %1371 = vmatpush1.bf16.msra.mxu0 %v1331
      %1372 = vmatprep.subr.bf16.mxu0 %v1334
      %1373 = vmatpush1.bf16.msra.mxu0 %v1333
      %1374 = vmatprep.subr.bf16.mxu0 %v1336
      %1375 = vmatpush1.bf16.msra.mxu0 %v1335
      %1376 = vmatprep.subr.bf16.mxu0 %v1338
      %1377 = vmatpush1.bf16.msra.mxu0 %v1337
      %1378 = vmatprep.subr.bf16.mxu0 %v1340
      %1379 = vmatpush1.bf16.msra.mxu0 %v1339
      %1380 = vmatprep.subr.bf16.mxu0 %v1342
      %1381 = vmatpush1.bf16.msra.mxu0 %v1341
      %1382 = vmatprep.subr.bf16.mxu0 %v1344
      %1383 = vmatpush1.bf16.msra.mxu0 %v1343
      %1384 = vmatprep.subr.bf16.mxu0 %v1346
      %1385 = vmatpush1.bf16.msra.mxu0 %v1345
      %1386 = vmatprep.subr.bf16.mxu0 0
      %1387 = vmatpush1.bf16.msra.mxu0 0
      %1388 = vmatprep.subr.bf16.mxu0 0
      %1389 = vmatpush1.bf16.msra.mxu0 0
      %1390 = vmatprep.subr.bf16.mxu0 0
      %1391 = vmatpush1.bf16.msra.mxu0 0
      %1392 = vmatprep.subr.bf16.mxu0 0
      %1393 = vmatpush1.bf16.msra.mxu0 0
      %1394 = vmatprep.subr.bf16.mxu0 0
      %1395 = vmatpush1.bf16.msra.mxu0 0
      %1396 = vmatprep.subr.bf16.mxu0 0
      %1397 = vmatpush1.bf16.msra.mxu0 0
      %1398 = vmatprep.subr.bf16.mxu0 0
      %1399 = vmatpush1.bf16.msra.mxu0 0
      %1400 = vmatprep.mubr.bf16.mxu0 %v1366
      %1401 = vmatmul.mubr.bf16.gmra.mrb[0].mxu0 %v1102
      %v1402 = vpop.f32.mrb[0].mxu0
      %v1403 = vadd.f32 0.0, %v1402
      %v1404 = vpop.f32.mrb[0].mxu0
      %v1405 = vadd.f32 0.0, %v1404
      %v1406 = vpop.f32.mrb[0].mxu0
      %v1407 = vpop.f32.mrb[0].mxu0
      %1408 = vdwg.mxu0
      %v1409 = vsub.f32 %v1251, %v1403
      %v1410 = vsub.f32 %v1253, %v1405
      %v1411 = vrot.slane %v614, 4
      %v1412 = vadd.f32 %v614, %v1411
      %v1413 = vrot.slane %v1412, 2
      %v1414 = vadd.f32 %v1412, %v1413
      %v1415 = vrot.slane %v1414, 1
      %v1416 = vadd.f32 %v1414, %v1415
      %v1417 = vrot.slane %v615, 4
      %v1418 = vadd.f32 %v615, %v1417
      %v1419 = vrot.slane %v1418, 2
      %v1420 = vadd.f32 %v1418, %v1419
      %v1421 = vrot.slane %v1420, 1
      %v1422 = vadd.f32 %v1420, %v1421
      %v1423 = vrot.slane %v1409, 4
      %v1424 = vadd.f32 %v1409, %v1423
      %v1425 = vrot.slane %v1424, 2
      %v1426 = vadd.f32 %v1424, %v1425
      %v1427 = vrot.slane %v1426, 1
      %v1428 = vadd.f32 %v1426, %v1427
      %v1429 = vrot.slane %v1410, 4
      %v1430 = vadd.f32 %v1410, %v1429
      %v1431 = vrot.slane %v1430, 2
      %v1432 = vadd.f32 %v1430, %v1431
      %v1433 = vrot.slane %v1432, 1
      %v1434 = vadd.f32 %v1432, %v1433
      %v1435 = vadd.f32 %v1416, %v1428
      %v1436 = vadd.f32 %v1422, %v1434
      %v1437 = vmul.f32 %v1435, 0.083333336
      %v1438 = vmul.f32 %v1436, 0.083333336
      %v1439 = vsub.f32 %v614, %v1437
      %v1440 = vsub.f32 %v615, %v1438
      %v1441 = vsub.f32 %v1409, %v1437
      %v1442 = vsub.f32 %v1410, %v1438
      %v1443 = vmul.f32 %v1439, %v1439
      %v1444 = vmul.f32 %v1440, %v1440
      %v1445 = vrot.slane %v1443, 4
      %v1446 = vadd.f32 %v1443, %v1445
      %v1447 = vrot.slane %v1446, 2
      %v1448 = vadd.f32 %v1446, %v1447
      %v1449 = vrot.slane %v1448, 1
      %v1450 = vadd.f32 %v1448, %v1449
      %v1451 = vrot.slane %v1444, 4
      %v1452 = vadd.f32 %v1444, %v1451
      %v1453 = vrot.slane %v1452, 2
      %v1454 = vadd.f32 %v1452, %v1453
      %v1455 = vrot.slane %v1454, 1
      %v1456 = vadd.f32 %v1454, %v1455
      %v1457 = vmul.f32 %v1441, %v1441
      %v1458 = vmul.f32 %v1442, %v1442
      %v1459 = vrot.slane %v1457, 4
      %v1460 = vadd.f32 %v1457, %v1459
      %v1461 = vrot.slane %v1460, 2
      %v1462 = vadd.f32 %v1460, %v1461
      %v1463 = vrot.slane %v1462, 1
      %v1464 = vadd.f32 %v1462, %v1463
      %v1465 = vrot.slane %v1458, 4
      %v1466 = vadd.f32 %v1458, %v1465
      %v1467 = vrot.slane %v1466, 2
      %v1468 = vadd.f32 %v1466, %v1467
      %v1469 = vrot.slane %v1468, 1
      %v1470 = vadd.f32 %v1468, %v1469
      %v1471 = vadd.f32 %v1450, %v1464
      %v1472 = vadd.f32 %v1456, %v1470
      %v1473 = vmul.f32 %v1437, 4.0
      %v1474 = vmul.f32 %v1438, 4.0
      %v1475 = vmul.f32 %v1473, %v1437
      %v1476 = vmul.f32 %v1474, %v1438
      %v1477 = vsub.f32 %v1471, %v1475
      %v1478 = vsub.f32 %v1472, %v1476
      %v1479 = vmul.f32 %v1477, 0.083333336
      %v1480 = vmul.f32 %v1478, 0.083333336
      %v1481 = vadd.f32 %v1479, 1e-06
      %v1482 = vadd.f32 %v1480, 1e-06
      %v1483 = vrsqrt.pop %v1481
      %v1484 = vrsqrt.pop %v1482
      %v1485 = vmul.f32 %v1439, %v1483
      %v1486 = vmul.f32 %v1440, %v1484
      %v1487 = vmul.f32 %v1441, %v1483
      %v1488 = vmul.f32 %v1442, %v1484
      %v1489 = vld [vmem:[%s5 + $0x20] sm:$0xff]
      %v1490 = vld [vmem:[%s5 + $0x28] sm:$0xff]
      %v1491 = vld [vmem:[%s5 + $0x30] sm:$0xff]
      %v1492 = vld [vmem:[%s5 + $0x38] sm:$0xff]
      %v1493 = vld [vmem:[%s6 + $0x38] sm:$0xff]
      %v1494 = vld [vmem:[%s6 + $0x40] sm:$0xff]
      %v1496 = vsel %vm303, %v1491, 0
      %v1499 = vsel %vm303, %v1492, 0
      %1501 = vmatprep.subr.mxu0 %v1488
      %1502 = vmatpush1.msra.mxu0 %v1487
      %1503 = vmatprep.subr.mxu0 0.0
      %1504 = vmatpush1.msra.mxu0 0.0
      %1505 = vmatprep.subr.mxu0 0.0
      %1506 = vmatpush1.msra.mxu0 0.0
      %1507 = vmatprep.subr.mxu0 0.0
      %1508 = vmatpush1.msra.mxu0 0.0
      %1509 = vmatprep.subr.mxu0 0.0
      %1510 = vmatpush1.msra.mxu0 0.0
      %1511 = vmatprep.subr.mxu0 0.0
      %1512 = vmatpush1.msra.mxu0 0.0
      %1513 = vmatprep.subr.mxu0 0.0
      %1514 = vmatpush1.msra.mxu0 0.0
      %1515 = vmatprep.subr.mxu0 0.0
      %1516 = vmatpush1.msra.mxu0 0.0
      %1517 = vmatprep.subr.mxu0 0.0
      %1518 = vmatpush1.msra.mxu0 0.0
      %1519 = vmatprep.subr.mxu0 0.0
      %1520 = vmatpush1.msra.mxu0 0.0
      %1521 = vmatprep.subr.mxu0 0.0
      %1522 = vmatpush1.msra.mxu0 0.0
      %1523 = vmatprep.subr.mxu0 0.0
      %1524 = vmatpush1.msra.mxu0 0.0
      %1525 = vmatprep.subr.mxu0 0.0
      %1526 = vmatpush1.msra.mxu0 0.0
      %1527 = vmatprep.subr.mxu0 0.0
      %1528 = vmatpush1.msra.mxu0 0.0
      %1529 = vmatprep.subr.mxu0 0.0
      %1530 = vmatpush1.msra.mxu0 0.0
      %1531 = vmatprep.subr.mxu0 0.0
      %1532 = vmatpush1.msra.mxu0 0.0
      %1533 = vmatprep.subr.mxu0 0.0
      %1534 = vmatpush1.msra.mxu0 0.0
      %1535 = vmatprep.subr.mxu0 0.0
      %1536 = vmatpush1.msra.mxu0 0.0
      %1537 = vmatprep.subr.mxu0 0.0
      %1538 = vmatpush1.msra.mxu0 0.0
      %1539 = vmatprep.subr.mxu0 0.0
      %1540 = vmatpush1.msra.mxu0 0.0
      %1541 = vmatprep.subr.mxu0 0.0
      %1542 = vmatpush1.msra.mxu0 0.0
      %1543 = vmatprep.subr.mxu0 0.0
      %1544 = vmatpush1.msra.mxu0 0.0
      %1545 = vmatprep.subr.mxu0 0.0
      %1546 = vmatpush1.msra.mxu0 0.0
      %1547 = vmatprep.subr.mxu0 0.0
      %1548 = vmatpush1.msra.mxu0 0.0
      %1549 = vmatprep.subr.mxu0 0.0
      %1550 = vmatpush1.msra.mxu0 0.0
      %1551 = vmatprep.subr.mxu0 0.0
      %1552 = vmatpush1.msra.mxu0 0.0
      %1553 = vmatprep.subr.mxu0 0.0
      %1554 = vmatpush1.msra.mxu0 0.0
      %1555 = vmatprep.subr.mxu0 0.0
      %1556 = vmatpush1.msra.mxu0 0.0
      %1557 = vmatprep.subr.mxu0 0.0
      %1558 = vmatpush1.msra.mxu0 0.0
      %1559 = vmatprep.subr.mxu0 0.0
      %1560 = vmatpush1.msra.mxu0 0.0
      %1561 = vmatprep.subr.mxu0 0.0
      %1562 = vmatpush1.msra.mxu0 0.0
      %1563 = vmatprep.subr.mxu0 0.0
      %1564 = vmatpush1.msra.mxu0 0.0
      %1565 = vmatprep.mubr.f32.mxu0 0.0
      %1566 = vmatmul.mubr.f32.gmra.mrb[0].mxu0 %v1496
      %v1567 = vpop.f32.mrb[0].mxu0
      %v1568 = vadd.f32 0.0, %v1567
      %v1569 = vpop.f32.mrb[0].mxu0
      %v1570 = vadd.f32 0.0, %v1569
      %1571 = vmatprep.mubr.f32.mxu0 0.0
      %1572 = vmatmul.mubr.f32.gmra.mrb[0].mxu0 %v1499
      %v1573 = vpop.f32.mrb[0].mxu0
      %v1574 = vadd.f32 0.0, %v1573
      %v1575 = vpop.f32.mrb[0].mxu0
      %v1576 = vadd.f32 0.0, %v1575
      %1577 = vdwg.mxu0
      %v1579 = vsel %vm303, %v1489, 0
      %v1582 = vsel %vm303, %v1490, 0
      %1584 = vmatprep.subr.mxu0 %v1486
      %1585 = vmatpush1.msra.mxu0 %v1485
      %1586 = vmatprep.subr.mxu0 0.0
      %1587 = vmatpush1.msra.mxu0 0.0
      %1588 = vmatprep.subr.mxu0 0.0
      %1589 = vmatpush1.msra.mxu0 0.0
      %1590 = vmatprep.subr.mxu0 0.0
      %1591 = vmatpush1.msra.mxu0 0.0
      %1592 = vmatprep.subr.mxu0 0.0
      %1593 = vmatpush1.msra.mxu0 0.0
      %1594 = vmatprep.subr.mxu0 0.0
      %1595 = vmatpush1.msra.mxu0 0.0
      %1596 = vmatprep.subr.mxu0 0.0
      %1597 = vmatpush1.msra.mxu0 0.0
      %1598 = vmatprep.subr.mxu0 0.0
      %1599 = vmatpush1.msra.mxu0 0.0
      %1600 = vmatprep.subr.mxu0 0.0
      %1601 = vmatpush1.msra.mxu0 0.0
      %1602 = vmatprep.subr.mxu0 0.0
      %1603 = vmatpush1.msra.mxu0 0.0
      %1604 = vmatprep.subr.mxu0 0.0
      %1605 = vmatpush1.msra.mxu0 0.0
      %1606 = vmatprep.subr.mxu0 0.0
      %1607 = vmatpush1.msra.mxu0 0.0
      %1608 = vmatprep.subr.mxu0 0.0
      %1609 = vmatpush1.msra.mxu0 0.0
      %1610 = vmatprep.subr.mxu0 0.0
      %1611 = vmatpush1.msra.mxu0 0.0
      %1612 = vmatprep.subr.mxu0 0.0
      %1613 = vmatpush1.msra.mxu0 0.0
      %1614 = vmatprep.subr.mxu0 0.0
      %1615 = vmatpush1.msra.mxu0 0.0
      %1616 = vmatprep.subr.mxu0 0.0
      %1617 = vmatpush1.msra.mxu0 0.0
      %1618 = vmatprep.subr.mxu0 0.0
      %1619 = vmatpush1.msra.mxu0 0.0
      %1620 = vmatprep.subr.mxu0 0.0
      %1621 = vmatpush1.msra.mxu0 0.0
      %1622 = vmatprep.subr.mxu0 0.0
      %1623 = vmatpush1.msra.mxu0 0.0
      %1624 = vmatprep.subr.mxu0 0.0
      %1625 = vmatpush1.msra.mxu0 0.0
      %1626 = vmatprep.subr.mxu0 0.0
      %1627 = vmatpush1.msra.mxu0 0.0
      %1628 = vmatprep.subr.mxu0 0.0
      %1629 = vmatpush1.msra.mxu0 0.0
      %1630 = vmatprep.subr.mxu0 0.0
      %1631 = vmatpush1.msra.mxu0 0.0
      %1632 = vmatprep.subr.mxu0 0.0
      %1633 = vmatpush1.msra.mxu0 0.0
      %1634 = vmatprep.subr.mxu0 0.0
      %1635 = vmatpush1.msra.mxu0 0.0
      %1636 = vmatprep.subr.mxu0 0.0
      %1637 = vmatpush1.msra.mxu0 0.0
      %1638 = vmatprep.subr.mxu0 0.0
      %1639 = vmatpush1.msra.mxu0 0.0
      %1640 = vmatprep.subr.mxu0 0.0
      %1641 = vmatpush1.msra.mxu0 0.0
      %1642 = vmatprep.subr.mxu0 0.0
      %1643 = vmatpush1.msra.mxu0 0.0
      %1644 = vmatprep.subr.mxu0 0.0
      %1645 = vmatpush1.msra.mxu0 0.0
      %1646 = vmatprep.subr.mxu0 0.0
      %1647 = vmatpush1.msra.mxu0 0.0
      %1648 = vmatprep.mubr.f32.mxu0 0.0
      %1649 = vmatmul.mubr.f32.gmra.mrb[0].mxu0 %v1579
      %v1650 = vpop.f32.mrb[0].mxu0
      %v1651 = vadd.f32 %v1568, %v1650
      %v1652 = vpop.f32.mrb[0].mxu0
      %v1653 = vadd.f32 %v1570, %v1652
      %1654 = vmatprep.mubr.f32.mxu0 0.0
      %1655 = vmatmul.mubr.f32.gmra.mrb[0].mxu0 %v1582
      %v1656 = vpop.f32.mrb[0].mxu0
      %v1657 = vadd.f32 %v1574, %v1656
      %v1658 = vpop.f32.mrb[0].mxu0
      %v1659 = vadd.f32 %v1576, %v1658
      %1660 = vdwg.mxu0
      %1662 = vset.pattern.permute.xlu0 0
      %1663 = vperm.xlu0 %1662, %v1493
      %v1664 = vpop.permute.xlu0 %1663
      %1667 = vset.pattern.permute.xlu0 0
      %1668 = vperm.xlu0 %1667, %v1494
      %v1669 = vpop.permute.xlu0 %1668
      %v1671 = vadd.f32 %v1651, %v1664
      %v1672 = vadd.f32 %v1653, %v1664
      %v1673 = vadd.f32 %v1657, %v1669
      %v1674 = vadd.f32 %v1659, %v1669
      %v1675 = vld [vmem:[%s5 + $0x18] sm:$0xff]
      %v1676 = vld [vmem:[%s6 + $0x48] sm:$0xff]
      %v1677 = vmul.f32 %v392, %v1671
      %v1678 = vmul.f32 %v394, %v1672
      %1680 = vset.pattern.permute.xlu0 0
      %1681 = vperm.xlu0 %1680, %v1676
      %v1682 = vpop.permute.xlu0 %1681
      %v1685 = vsel %vm303, %v1675, 0
      %1687 = vmatprep.subr.mxu0 %v1678
      %1688 = vmatpush1.msra.mxu0 %v1677
      %1689 = vmatprep.subr.mxu0 0.0
      %1690 = vmatpush1.msra.mxu0 0.0
      %1691 = vmatprep.subr.mxu0 0.0
      %1692 = vmatpush1.msra.mxu0 0.0
      %1693 = vmatprep.subr.mxu0 0.0
      %1694 = vmatpush1.msra.mxu0 0.0
      %1695 = vmatprep.subr.mxu0 0.0
      %1696 = vmatpush1.msra.mxu0 0.0
      %1697 = vmatprep.subr.mxu0 0.0
      %1698 = vmatpush1.msra.mxu0 0.0
      %1699 = vmatprep.subr.mxu0 0.0
      %1700 = vmatpush1.msra.mxu0 0.0
      %1701 = vmatprep.subr.mxu0 0.0
      %1702 = vmatpush1.msra.mxu0 0.0
      %1703 = vmatprep.subr.mxu0 0.0
      %1704 = vmatpush1.msra.mxu0 0.0
      %1705 = vmatprep.subr.mxu0 0.0
      %1706 = vmatpush1.msra.mxu0 0.0
      %1707 = vmatprep.subr.mxu0 0.0
      %1708 = vmatpush1.msra.mxu0 0.0
      %1709 = vmatprep.subr.mxu0 0.0
      %1710 = vmatpush1.msra.mxu0 0.0
      %1711 = vmatprep.subr.mxu0 0.0
      %1712 = vmatpush1.msra.mxu0 0.0
      %1713 = vmatprep.subr.mxu0 0.0
      %1714 = vmatpush1.msra.mxu0 0.0
      %1715 = vmatprep.subr.mxu0 0.0
      %1716 = vmatpush1.msra.mxu0 0.0
      %1717 = vmatprep.subr.mxu0 0.0
      %1718 = vmatpush1.msra.mxu0 0.0
      %1719 = vmatprep.subr.mxu0 0.0
      %1720 = vmatpush1.msra.mxu0 0.0
      %1721 = vmatprep.subr.mxu0 0.0
      %1722 = vmatpush1.msra.mxu0 0.0
      %1723 = vmatprep.subr.mxu0 0.0
      %1724 = vmatpush1.msra.mxu0 0.0
      %1725 = vmatprep.subr.mxu0 0.0
      %1726 = vmatpush1.msra.mxu0 0.0
      %1727 = vmatprep.subr.mxu0 0.0
      %1728 = vmatpush1.msra.mxu0 0.0
      %1729 = vmatprep.subr.mxu0 0.0
      %1730 = vmatpush1.msra.mxu0 0.0
      %1731 = vmatprep.subr.mxu0 0.0
      %1732 = vmatpush1.msra.mxu0 0.0
      %1733 = vmatprep.subr.mxu0 0.0
      %1734 = vmatpush1.msra.mxu0 0.0
      %1735 = vmatprep.subr.mxu0 0.0
      %1736 = vmatpush1.msra.mxu0 0.0
      %1737 = vmatprep.subr.mxu0 0.0
      %1738 = vmatpush1.msra.mxu0 0.0
      %1739 = vmatprep.subr.mxu0 0.0
      %1740 = vmatpush1.msra.mxu0 0.0
      %1741 = vmatprep.subr.mxu0 0.0
      %1742 = vmatpush1.msra.mxu0 0.0
      %1743 = vmatprep.subr.mxu0 0.0
      %1744 = vmatpush1.msra.mxu0 0.0
      %1745 = vmatprep.subr.mxu0 0.0
      %1746 = vmatpush1.msra.mxu0 0.0
      %1747 = vmatprep.subr.mxu0 0.0
      %1748 = vmatpush1.msra.mxu0 0.0
      %1749 = vmatprep.subr.mxu0 0.0
      %1750 = vmatpush1.msra.mxu0 0.0
      %1751 = vmatprep.mubr.f32.mxu0 0.0
      %1752 = vmatmul.mubr.f32.gmra.mrb[0].mxu0 %v1685
      %v1753 = vpop.f32.mrb[0].mxu0
      %v1754 = vadd.f32 %v1682, %v1753
      %v1755 = vpop.f32.mrb[0].mxu0
      %v1756 = vadd.f32 %v1682, %v1755
      %1757 = vdwg.mxu0
      %v1758 = vmul.f32 %v1754, %v1673
      %v1759 = vmul.f32 %v1756, %v1674
      %1760 = vst [vmem:[%s278] sm:$0xff] %v1758
      %1761 = vst [vmem:[%s278 + $0x8] sm:$0xff] %v1759
      %p1762 = scmp.lt.s32.totalorder %s18, 1
      %s1763 = scalar_select %p1762, %s18, 1
      %s1764 = smul.addr %s1763, 2
      %s1765 = smul.addr %s1764, 8
      %s1766 = scalar_lea.vmem %s7, %s1765
      // Predicated region
      $region49: #{gnconv_forward.1} parent=47 // pred_check
        %p1767 = pneg %p188
      $region50: #{gnconv_forward.1} parent=47 // pred_check_branch
        %1769 = sbr.rel (%p1767) target = $region52
      $region51: #{gnconv_forward.1} parent=47 // pred_region
        _
      $region52: #{gnconv_forward.1} parent=47 // pred_fallthru
        _
    $region48: #{gnconv_forward.1} parent=5 // pred_fallthru
      _
    %p1770 = scmp.le.s32.totalorder 2, %s13
    // Predicated region
    $region53: #{gnconv_forward.1} parent=5 // pred_check
      %p1771 = pneg %p1770
    $region54: #{gnconv_forward.1} parent=5 // pred_check_branch
      %1773 = sbr.rel (%p1771) target = $region56
    $region55: #{gnconv_forward.1} parent=5 // pred_region
      %s1774 = ssub.s32 %s13, 2
      // Predicated region
      $region57: #{gnconv_forward.1} parent=55 // pred_check
        %p1775 = pneg %p194
      $region58: #{gnconv_forward.1} parent=55 // pred_check_branch
        %1777 = sbr.rel (%p1775) target = $region60
      $region59: #{gnconv_forward.1} parent=55 // pred_region
        %p1778 = scmp.lt.s32.totalorder %s19, 1
        %s1779 = scalar_select %p1778, %s19, 1
        %s1780 = smul.addr %s1779, 2
        %s1781 = smul.addr %s1780, 8
        %s1782 = scalar_lea.vmem %s7, %s1781
      $region60: #{gnconv_forward.1} parent=55 // pred_fallthru
        _
    $region56: #{gnconv_forward.1} parent=5 // pred_fallthru
      _
  $region6: #{gnconv_forward.1} parent=0 // loop_footer
    %s17 = sadd.s32 1, %s13
  $region7: #{gnconv_forward.1} parent=0 // loop_footer_branch
    %12 = sbr.rel target = $region3
  $region8: #{gnconv_forward.1} parent=0 // loop_exit
    _

</llo_original>
